<compile_context>
chip_gen: v5e
topology: v5e:2x2
jax: 0.10.0
libtpu: 0.0.40
codegen_flags: <defaults>
</compile_context>

<pallas_src>
import functools

import jax
import jax.numpy as jnp
from jax.experimental import pallas as pl
from jax.experimental.pallas import tpu as pltpu

_EPS = 1e-5
_VMEM_LIMIT = 32 * 1024 * 1024  # fits the scoped-VMEM budget on v5e/v6e/v7x


# ----------------------------------------------------------------------------
# Fused kernel: conv3x3 + bias + ReLU + training-mode BatchNorm (whole batch)
# ----------------------------------------------------------------------------
def _conv_bridge_fused_kernel(xp_ref, wb_ref, b_ref, g_ref, bt_ref, o_ref,
                              y_ref, *, N, H, W, C):
    """All tensors live in the packed lane-dense layout (rows, W*C).

    xp_ref: (N, H+2, (W+2)*C) f32   spatially padded input, (w, c) packed on lanes
    wb_ref: (3, (W+2)*C, W*C) bf16  block-banded conv weights, one per kh
    b_ref:  (1, W*C)          f32   conv bias, tiled over w
    g_ref:  (1, W*C)          f32   BN gamma, tiled over w
    bt_ref: (1, W*C)          f32   BN beta, tiled over w
    o_ref:  (N, H, W*C)       f32   final normalized output
    y_ref:  (N, H, W*C)       f32   VMEM scratch: conv+ReLU activations
    """
    WC = W * C
    inv_cnt = 1.0 / float(N * H * W)

    s_p = jnp.zeros((1, WC), jnp.float32)
    sq_p = jnp.zeros((1, WC), jnp.float32)

    # ---- Phase 1: conv (3 block-banded MXU matmuls / image) + bias + ReLU ----
    for n in range(N):
        acc = jnp.zeros((H, WC), jnp.float32)
        for kh in range(3):
            a = xp_ref[n, kh:kh + H, :].astype(jnp.bfloat16)     # (H, (W+2)*C)
            acc = acc + jnp.dot(a, wb_ref[kh],
                                preferred_element_type=jnp.float32)
        y = jnp.maximum(acc + b_ref[...], 0.0)                   # bias + ReLU
        y_ref[n] = y                                             # lane-dense store
        s_p = s_p + jnp.sum(y, axis=0, keepdims=True)            # (1, W*C)
        sq_p = sq_p + jnp.sum(y * y, axis=0, keepdims=True)

    # ---- Phase 2: fold W groups on the lane axis -> per-channel batch stats --
    s_c = jnp.zeros((1, C), jnp.float32)
    sq_c = jnp.zeros((1, C), jnp.float32)
    for wo in range(W):
        s_c = s_c + s_p[:, wo * C:(wo + 1) * C]
        sq_c = sq_c + sq_p[:, wo * C:(wo + 1) * C]
    mean_c = s_c * inv_cnt
    var_c = sq_c * inv_cnt - mean_c * mean_c                     # biased variance
    inv_std_c = jax.lax.rsqrt(var_c + _EPS)

    # Re-pack per-channel scale/shift into the lane-dense (1, W*C) layout.
    mean_p = jnp.concatenate([mean_c] * W, axis=1)               # (1, W*C)
    inv_std_p = jnp.concatenate([inv_std_c] * W, axis=1)
    scale_p = g_ref[...] * inv_std_p
    shift_p = bt_ref[...] - mean_p * scale_p

    # ---- Phase 3: normalize and store ----------------------------------------
    for n in range(N):
        o_ref[n] = y_ref[n] * scale_p + shift_p


# ----------------------------------------------------------------------------
# One-time parameter repacking (hoisted out of the jit'd forward)
# ----------------------------------------------------------------------------
def prepare_params(w, b, gamma, beta, W):
    """w: (Cout, Cin, 3, 3) PyTorch layout; b/gamma/beta: (C,); W: image width."""
    cout, cin, ksh, ksw = w.shape
    assert (ksh, ksw) == (3, 3) and cout == cin
    C = cout
    # (Cout, Cin, 3, 3) -> (kh, kw, Cin, Cout)
    w_taps = jnp.transpose(w.astype(jnp.float32), (2, 3, 1, 0))
    # Block-banded matrices B[kh] of shape ((W+2)*C, W*C) with
    #   B[kh][wi*C + ci, wo*C + co] = w_taps[kh, wi - wo, ci, co]  for 0<=wi-wo<=2
    wi = jnp.arange(W + 2)[:, None]
    wo = jnp.arange(W)[None, :]
    kw_idx = wi - wo                                         # (W+2, W)
    valid = (kw_idx >= 0) & (kw_idx <= 2)
    kw_safe = jnp.clip(kw_idx, 0, 2)
    b5 = w_taps[:, kw_safe, :, :]                            # (3, W+2, W, Cin, Cout)
    b5 = jnp.where(valid[None, :, :, None, None], b5, 0.0)
    banded = jnp.transpose(b5, (0, 1, 3, 2, 4)).reshape(3, (W + 2) * C, W * C)
    return {
        "w_banded": banded.astype(jnp.bfloat16),
        "bias_p": jnp.tile(b.astype(jnp.float32), W).reshape(1, W * C),
        "gamma_p": jnp.tile(gamma.astype(jnp.float32), W).reshape(1, W * C),
        "beta_p": jnp.tile(beta.astype(jnp.float32), W).reshape(1, W * C),
    }


# ----------------------------------------------------------------------------
# Forward pass (NCHW in, NCHW out -- matches the PyTorch module interface)
# ----------------------------------------------------------------------------
@jax.jit
def conv_bridge_forward(prep, x_nchw):
    n, c, h, w = x_nchw.shape
    wc = w * c
    wpc = (w + 2) * c
    # NCHW -> NHWC, zero spatial pad, pack (w, c) onto the lane axis.
    x = jnp.transpose(x_nchw, (0, 2, 3, 1))
    xp = jnp.pad(x, ((0, 0), (1, 1), (1, 1), (0, 0))).reshape(n, h + 2, wpc)

    out_packed = pl.pallas_call(
        functools.partial(_conv_bridge_fused_kernel, N=n, H=h, W=w, C=c),
        out_shape=jax.ShapeDtypeStruct((n, h, wc), jnp.float32),
        grid=(1,),
        in_specs=[
            pl.BlockSpec((n, h + 2, wpc), lambda i: (0, 0, 0)),
            pl.BlockSpec((3, wpc, wc), lambda i: (0, 0, 0)),
            pl.BlockSpec((1, wc), lambda i: (0, 0)),
            pl.BlockSpec((1, wc), lambda i: (0, 0)),
            pl.BlockSpec((1, wc), lambda i: (0, 0)),
        ],
        out_specs=pl.BlockSpec((n, h, wc), lambda i: (0, 0, 0)),
        scratch_shapes=[pltpu.VMEM((n, h, wc), jnp.float32)],
        compiler_params=pltpu.CompilerParams(
            dimension_semantics=("arbitrary",),
            vmem_limit_bytes=_VMEM_LIMIT),
    )(xp, prep["w_banded"], prep["bias_p"], prep["gamma_p"], prep["beta_p"])

    out = out_packed.reshape(n, h, w, c)
    return jnp.transpose(out, (0, 3, 1, 2))                   # NHWC -> NCHW


# ----------------------------------------------------------------------------
# Plain-JAX reference (same bf16 operand rounding) for a correctness check
# ----------------------------------------------------------------------------
def reference_forward(w, b, gamma, beta, x_nchw):
    x = jnp.transpose(x_nchw, (0, 2, 3, 1))
    x = x.astype(jnp.bfloat16).astype(jnp.float32)
    wq = w.astype(jnp.bfloat16).astype(jnp.float32)
    y = jax.lax.conv_general_dilated(
        x, jnp.transpose(wq, (2, 3, 1, 0)), (1, 1), "SAME",
        dimension_numbers=("NHWC", "HWIO", "NHWC"),
        preferred_element_type=jnp.float32)
    y = jnp.maximum(y + b, 0.0)
    mean = jnp.mean(y, axis=(0, 1, 2))
    var = jnp.mean(jnp.square(y - mean), axis=(0, 1, 2))
    y = (y - mean) * jax.lax.rsqrt(var + _EPS) * gamma + beta
    return jnp.transpose(y, (0, 3, 1, 2))


# ----------------------------------------------------------------------------
if __name__ == "__main__":
    key = jax.random.PRNGKey(0)
    k_w, k_b, k_x = jax.random.split(key, 3)

    channels, batch, H, W = 16, 2, 16, 16

    # Conv2d(channels, channels, 3, padding=1) params (PyTorch layout);
    # BatchNorm2d default affine params (weight=1, bias=0).
    bound = 1.0 / ((channels * 9) ** 0.5)
    w = jax.random.uniform(k_w, (channels, channels, 3, 3), jnp.float32,
                           -bound, bound)
    b = jax.random.uniform(k_b, (channels,), jnp.float32, -bound, bound)
    gamma = jnp.ones((channels,), jnp.float32)
    beta = jnp.zeros((channels,), jnp.float32)

    x = jax.random.normal(k_x, (batch, channels, H, W), jnp.float32)  # NCHW

    prep = prepare_params(w, b, gamma, beta, W)   # one-time repack, outside jit
    y = conv_bridge_forward(prep, x)
    jax.block_until_ready(y)

    assert y.shape == (batch, channels, H, W), y.shape
    assert y.dtype == jnp.float32

    y_ref = reference_forward(w, b, gamma, beta, x)
    max_err = float(jnp.max(jnp.abs(y - y_ref)))
    assert jnp.allclose(y, y_ref, atol=5e-3, rtol=5e-3), max_err

    print("KERNEL_OK")
</pallas_src>

<mosaic_0001>
module attributes {stable_mosaic.version = 11 : i64} {
  func.func @_conv_bridge_fused_kernel(%arg0: i32, %arg1: memref<2x18x288xf32, #tpu.memory_space<vmem>>, %arg2: memref<3x288x256xbf16, #tpu.memory_space<vmem>>, %arg3: memref<1x256xf32, #tpu.memory_space<vmem>>, %arg4: memref<1x256xf32, #tpu.memory_space<vmem>>, %arg5: memref<1x256xf32, #tpu.memory_space<vmem>>, %arg6: memref<2x16x256xf32, #tpu.memory_space<vmem>>, %arg7: memref<2x16x256xf32, #tpu.memory_space<vmem>>) attributes {dimension_semantics = [#tpu.dimension_semantics<arbitrary>], iteration_bounds = array<i64: 1>, scalar_prefetch = 0 : i64, scratch_operands = 1 : i64, tpu.core_type = #tpu.core_type<tc>, window_params = [{pipeline_mode = #tpu.pipeline_mode<synchronous>, transform_indices = @transform_0, window_bounds = array<i64: 2, 18, 288>}, {pipeline_mode = #tpu.pipeline_mode<synchronous>, transform_indices = @transform_1, window_bounds = array<i64: 3, 288, 256>}, {pipeline_mode = #tpu.pipeline_mode<synchronous>, transform_indices = @transform_2, window_bounds = array<i64: 1, 256>}, {pipeline_mode = #tpu.pipeline_mode<synchronous>, transform_indices = @transform_3, window_bounds = array<i64: 1, 256>}, {pipeline_mode = #tpu.pipeline_mode<synchronous>, transform_indices = @transform_4, window_bounds = array<i64: 1, 256>}, {pipeline_mode = #tpu.pipeline_mode<synchronous>, transform_indices = @transform_5, window_bounds = array<i64: 2, 16, 256>}]} {
    %cst = arith.constant 0.000000e+00 : f32
    %0 = vector.broadcast %cst : f32 to vector<1x256xf32>
    %cst_0 = arith.constant 0.000000e+00 : f32
    %1 = vector.broadcast %cst_0 : f32 to vector<1x256xf32>
    %cst_1 = arith.constant 0.000000e+00 : f32
    %2 = vector.broadcast %cst_1 : f32 to vector<16x256xf32>
    %c0 = arith.constant 0 : index
    %c0_2 = arith.constant 0 : index
    %c0_3 = arith.constant 0 : index
    %3 = vector.load %arg1[%c0, %c0_2, %c0_3] : memref<2x18x288xf32, #tpu.memory_space<vmem>>, vector<1x16x288xf32>
    %4 = vector.shape_cast %3 : vector<1x16x288xf32> to vector<16x288xf32>
    %5 = arith.truncf %4 : vector<16x288xf32> to vector<16x288xbf16>
    %c0_4 = arith.constant 0 : index
    %c0_5 = arith.constant 0 : index
    %c0_6 = arith.constant 0 : index
    %6 = vector.load %arg2[%c0_4, %c0_5, %c0_6] : memref<3x288x256xbf16, #tpu.memory_space<vmem>>, vector<1x288x256xbf16>
    %7 = vector.shape_cast %6 : vector<1x288x256xbf16> to vector<288x256xbf16>
    %cst_7 = arith.constant dense<0.000000e+00> : vector<16x256xf32>
    %8 = tpu.matmul %5, %7, %cst_7 {dimension_numbers = #tpu.dot_dimension_numbers<[1], [0], [0], [1], [0, 0, 1, 1], [], []>} : vector<16x288xbf16>, vector<288x256xbf16>, vector<16x256xf32> -> vector<16x256xf32>
    %9 = arith.addf %2, %8 : vector<16x256xf32>
    %c0_8 = arith.constant 0 : index
    %c1 = arith.constant 1 : index
    %c0_9 = arith.constant 0 : index
    %10 = vector.load %arg1[%c0_8, %c1, %c0_9] : memref<2x18x288xf32, #tpu.memory_space<vmem>>, vector<1x16x288xf32>
    %11 = vector.shape_cast %10 : vector<1x16x288xf32> to vector<16x288xf32>
    %12 = arith.truncf %11 : vector<16x288xf32> to vector<16x288xbf16>
    %c1_10 = arith.constant 1 : index
    %c0_11 = arith.constant 0 : index
    %c0_12 = arith.constant 0 : index
    %13 = vector.load %arg2[%c1_10, %c0_11, %c0_12] : memref<3x288x256xbf16, #tpu.memory_space<vmem>>, vector<1x288x256xbf16>
    %14 = vector.shape_cast %13 : vector<1x288x256xbf16> to vector<288x256xbf16>
    %cst_13 = arith.constant dense<0.000000e+00> : vector<16x256xf32>
    %15 = tpu.matmul %12, %14, %cst_13 {dimension_numbers = #tpu.dot_dimension_numbers<[1], [0], [0], [1], [0, 0, 1, 1], [], []>} : vector<16x288xbf16>, vector<288x256xbf16>, vector<16x256xf32> -> vector<16x256xf32>
    %16 = arith.addf %9, %15 : vector<16x256xf32>
    %c0_14 = arith.constant 0 : index
    %c2 = arith.constant 2 : index
    %c0_15 = arith.constant 0 : index
    %17 = vector.load %arg1[%c0_14, %c2, %c0_15] : memref<2x18x288xf32, #tpu.memory_space<vmem>>, vector<1x16x288xf32>
    %18 = vector.shape_cast %17 : vector<1x16x288xf32> to vector<16x288xf32>
    %19 = arith.truncf %18 : vector<16x288xf32> to vector<16x288xbf16>
    %c2_16 = arith.constant 2 : index
    %c0_17 = arith.constant 0 : index
    %c0_18 = arith.constant 0 : index
    %20 = vector.load %arg2[%c2_16, %c0_17, %c0_18] : memref<3x288x256xbf16, #tpu.memory_space<vmem>>, vector<1x288x256xbf16>
    %21 = vector.shape_cast %20 : vector<1x288x256xbf16> to vector<288x256xbf16>
    %cst_19 = arith.constant dense<0.000000e+00> : vector<16x256xf32>
    %22 = tpu.matmul %19, %21, %cst_19 {dimension_numbers = #tpu.dot_dimension_numbers<[1], [0], [0], [1], [0, 0, 1, 1], [], []>} : vector<16x288xbf16>, vector<288x256xbf16>, vector<16x256xf32> -> vector<16x256xf32>
    %23 = arith.addf %16, %22 : vector<16x256xf32>
    %c0_20 = arith.constant 0 : index
    %c0_21 = arith.constant 0 : index
    %24 = vector.load %arg3[%c0_20, %c0_21] : memref<1x256xf32, #tpu.memory_space<vmem>>, vector<1x256xf32>
    %25 = vector.broadcast %24 : vector<1x256xf32> to vector<16x256xf32>
    %26 = arith.addf %23, %25 : vector<16x256xf32>
    %cst_22 = arith.constant 0.000000e+00 : f32
    %27 = vector.broadcast %cst_22 : f32 to vector<16x256xf32>
    %28 = arith.maximumf %26, %27 : vector<16x256xf32>
    %c0_23 = arith.constant 0 : index
    %c0_24 = arith.constant 0 : index
    %c0_25 = arith.constant 0 : index
    %29 = vector.load %arg7[%c0_23, %c0_24, %c0_25] : memref<2x16x256xf32, #tpu.memory_space<vmem>>, vector<1x16x256xf32>
    %30 = vector.shape_cast %29 : vector<1x16x256xf32> to vector<16x256xf32>
    %31 = vector.shape_cast %28 : vector<16x256xf32> to vector<1x16x256xf32>
    tpu.vector_store %arg7[%c0_23, %c0_24, %c0_25], %31 {strides = array<i32>} : memref<2x16x256xf32, #tpu.memory_space<vmem>>, vector<1x16x256xf32>,
    %cst_26 = arith.constant dense<0.000000e+00> : vector<256xf32>
    %32 = vector.multi_reduction <add>, %28, %cst_26 [0] : vector<16x256xf32> to vector<256xf32>
    %33 = vector.shape_cast %32 : vector<256xf32> to vector<1x256xf32>
    %34 = arith.addf %0, %33 : vector<1x256xf32>
    %35 = arith.mulf %28, %28 : vector<16x256xf32>
    %cst_27 = arith.constant dense<0.000000e+00> : vector<256xf32>
    %36 = vector.multi_reduction <add>, %35, %cst_27 [0] : vector<16x256xf32> to vector<256xf32>
    %37 = vector.shape_cast %36 : vector<256xf32> to vector<1x256xf32>
    %38 = arith.addf %1, %37 : vector<1x256xf32>
    %cst_28 = arith.constant 0.000000e+00 : f32
    %39 = vector.broadcast %cst_28 : f32 to vector<16x256xf32>
    %c1_29 = arith.constant 1 : index
    %c0_30 = arith.constant 0 : index
    %c0_31 = arith.constant 0 : index
    %40 = vector.load %arg1[%c1_29, %c0_30, %c0_31] : memref<2x18x288xf32, #tpu.memory_space<vmem>>, vector<1x16x288xf32>
    %41 = vector.shape_cast %40 : vector<1x16x288xf32> to vector<16x288xf32>
    %42 = arith.truncf %41 : vector<16x288xf32> to vector<16x288xbf16>
    %c0_32 = arith.constant 0 : index
    %c0_33 = arith.constant 0 : index
    %c0_34 = arith.constant 0 : index
    %43 = vector.load %arg2[%c0_32, %c0_33, %c0_34] : memref<3x288x256xbf16, #tpu.memory_space<vmem>>, vector<1x288x256xbf16>
    %44 = vector.shape_cast %43 : vector<1x288x256xbf16> to vector<288x256xbf16>
    %cst_35 = arith.constant dense<0.000000e+00> : vector<16x256xf32>
    %45 = tpu.matmul %42, %44, %cst_35 {dimension_numbers = #tpu.dot_dimension_numbers<[1], [0], [0], [1], [0, 0, 1, 1], [], []>} : vector<16x288xbf16>, vector<288x256xbf16>, vector<16x256xf32> -> vector<16x256xf32>
    %46 = arith.addf %39, %45 : vector<16x256xf32>
    %c1_36 = arith.constant 1 : index
    %c1_37 = arith.constant 1 : index
    %c0_38 = arith.constant 0 : index
    %47 = vector.load %arg1[%c1_36, %c1_37, %c0_38] : memref<2x18x288xf32, #tpu.memory_space<vmem>>, vector<1x16x288xf32>
    %48 = vector.shape_cast %47 : vector<1x16x288xf32> to vector<16x288xf32>
    %49 = arith.truncf %48 : vector<16x288xf32> to vector<16x288xbf16>
    %c1_39 = arith.constant 1 : index
    %c0_40 = arith.constant 0 : index
    %c0_41 = arith.constant 0 : index
    %50 = vector.load %arg2[%c1_39, %c0_40, %c0_41] : memref<3x288x256xbf16, #tpu.memory_space<vmem>>, vector<1x288x256xbf16>
    %51 = vector.shape_cast %50 : vector<1x288x256xbf16> to vector<288x256xbf16>
    %cst_42 = arith.constant dense<0.000000e+00> : vector<16x256xf32>
    %52 = tpu.matmul %49, %51, %cst_42 {dimension_numbers = #tpu.dot_dimension_numbers<[1], [0], [0], [1], [0, 0, 1, 1], [], []>} : vector<16x288xbf16>, vector<288x256xbf16>, vector<16x256xf32> -> vector<16x256xf32>
    %53 = arith.addf %46, %52 : vector<16x256xf32>
    %c1_43 = arith.constant 1 : index
    %c2_44 = arith.constant 2 : index
    %c0_45 = arith.constant 0 : index
    %54 = vector.load %arg1[%c1_43, %c2_44, %c0_45] : memref<2x18x288xf32, #tpu.memory_space<vmem>>, vector<1x16x288xf32>
    %55 = vector.shape_cast %54 : vector<1x16x288xf32> to vector<16x288xf32>
    %56 = arith.truncf %55 : vector<16x288xf32> to vector<16x288xbf16>
    %c2_46 = arith.constant 2 : index
    %c0_47 = arith.constant 0 : index
    %c0_48 = arith.constant 0 : index
    %57 = vector.load %arg2[%c2_46, %c0_47, %c0_48] : memref<3x288x256xbf16, #tpu.memory_space<vmem>>, vector<1x288x256xbf16>
    %58 = vector.shape_cast %57 : vector<1x288x256xbf16> to vector<288x256xbf16>
    %cst_49 = arith.constant dense<0.000000e+00> : vector<16x256xf32>
    %59 = tpu.matmul %56, %58, %cst_49 {dimension_numbers = #tpu.dot_dimension_numbers<[1], [0], [0], [1], [0, 0, 1, 1], [], []>} : vector<16x288xbf16>, vector<288x256xbf16>, vector<16x256xf32> -> vector<16x256xf32>
    %60 = arith.addf %53, %59 : vector<16x256xf32>
    %c0_50 = arith.constant 0 : index
    %c0_51 = arith.constant 0 : index
    %61 = vector.load %arg3[%c0_50, %c0_51] : memref<1x256xf32, #tpu.memory_space<vmem>>, vector<1x256xf32>
    %62 = vector.broadcast %61 : vector<1x256xf32> to vector<16x256xf32>
    %63 = arith.addf %60, %62 : vector<16x256xf32>
    %cst_52 = arith.constant 0.000000e+00 : f32
    %64 = vector.broadcast %cst_52 : f32 to vector<16x256xf32>
    %65 = arith.maximumf %63, %64 : vector<16x256xf32>
    %c1_53 = arith.constant 1 : index
    %c0_54 = arith.constant 0 : index
    %c0_55 = arith.constant 0 : index
    %66 = vector.load %arg7[%c1_53, %c0_54, %c0_55] : memref<2x16x256xf32, #tpu.memory_space<vmem>>, vector<1x16x256xf32>
    %67 = vector.shape_cast %66 : vector<1x16x256xf32> to vector<16x256xf32>
    %68 = vector.shape_cast %65 : vector<16x256xf32> to vector<1x16x256xf32>
    tpu.vector_store %arg7[%c1_53, %c0_54, %c0_55], %68 {strides = array<i32>} : memref<2x16x256xf32, #tpu.memory_space<vmem>>, vector<1x16x256xf32>,
    %cst_56 = arith.constant dense<0.000000e+00> : vector<256xf32>
    %69 = vector.multi_reduction <add>, %65, %cst_56 [0] : vector<16x256xf32> to vector<256xf32>
    %70 = vector.shape_cast %69 : vector<256xf32> to vector<1x256xf32>
    %71 = arith.addf %34, %70 : vector<1x256xf32>
    %72 = arith.mulf %65, %65 : vector<16x256xf32>
    %cst_57 = arith.constant dense<0.000000e+00> : vector<256xf32>
    %73 = vector.multi_reduction <add>, %72, %cst_57 [0] : vector<16x256xf32> to vector<256xf32>
    %74 = vector.shape_cast %73 : vector<256xf32> to vector<1x256xf32>
    %75 = arith.addf %38, %74 : vector<1x256xf32>
    %cst_58 = arith.constant 0.000000e+00 : f32
    %76 = vector.broadcast %cst_58 : f32 to vector<1x16xf32>
    %cst_59 = arith.constant 0.000000e+00 : f32
    %77 = vector.broadcast %cst_59 : f32 to vector<1x16xf32>
    %78 = vector.extract_strided_slice %71 {offsets = [0, 0], sizes = [1, 16], strides = [1, 1]} : vector<1x256xf32> to vector<1x16xf32>
    %79 = arith.addf %76, %78 : vector<1x16xf32>
    %80 = vector.extract_strided_slice %75 {offsets = [0, 0], sizes = [1, 16], strides = [1, 1]} : vector<1x256xf32> to vector<1x16xf32>
    %81 = arith.addf %77, %80 : vector<1x16xf32>
    %82 = vector.extract_strided_slice %71 {offsets = [0, 16], sizes = [1, 16], strides = [1, 1]} : vector<1x256xf32> to vector<1x16xf32>
    %83 = arith.addf %79, %82 : vector<1x16xf32>
    %84 = vector.extract_strided_slice %75 {offsets = [0, 16], sizes = [1, 16], strides = [1, 1]} : vector<1x256xf32> to vector<1x16xf32>
    %85 = arith.addf %81, %84 : vector<1x16xf32>
    %86 = vector.extract_strided_slice %71 {offsets = [0, 32], sizes = [1, 16], strides = [1, 1]} : vector<1x256xf32> to vector<1x16xf32>
    %87 = arith.addf %83, %86 : vector<1x16xf32>
    %88 = vector.extract_strided_slice %75 {offsets = [0, 32], sizes = [1, 16], strides = [1, 1]} : vector<1x256xf32> to vector<1x16xf32>
    %89 = arith.addf %85, %88 : vector<1x16xf32>
    %90 = vector.extract_strided_slice %71 {offsets = [0, 48], sizes = [1, 16], strides = [1, 1]} : vector<1x256xf32> to vector<1x16xf32>
    %91 = arith.addf %87, %90 : vector<1x16xf32>
    %92 = vector.extract_strided_slice %75 {offsets = [0, 48], sizes = [1, 16], strides = [1, 1]} : vector<1x256xf32> to vector<1x16xf32>
    %93 = arith.addf %89, %92 : vector<1x16xf32>
    %94 = vector.extract_strided_slice %71 {offsets = [0, 64], sizes = [1, 16], strides = [1, 1]} : vector<1x256xf32> to vector<1x16xf32>
    %95 = arith.addf %91, %94 : vector<1x16xf32>
    %96 = vector.extract_strided_slice %75 {offsets = [0, 64], sizes = [1, 16], strides = [1, 1]} : vector<1x256xf32> to vector<1x16xf32>
    %97 = arith.addf %93, %96 : vector<1x16xf32>
    %98 = vector.extract_strided_slice %71 {offsets = [0, 80], sizes = [1, 16], strides = [1, 1]} : vector<1x256xf32> to vector<1x16xf32>
    %99 = arith.addf %95, %98 : vector<1x16xf32>
    %100 = vector.extract_strided_slice %75 {offsets = [0, 80], sizes = [1, 16], strides = [1, 1]} : vector<1x256xf32> to vector<1x16xf32>
    %101 = arith.addf %97, %100 : vector<1x16xf32>
    %102 = vector.extract_strided_slice %71 {offsets = [0, 96], sizes = [1, 16], strides = [1, 1]} : vector<1x256xf32> to vector<1x16xf32>
    %103 = arith.addf %99, %102 : vector<1x16xf32>
    %104 = vector.extract_strided_slice %75 {offsets = [0, 96], sizes = [1, 16], strides = [1, 1]} : vector<1x256xf32> to vector<1x16xf32>
    %105 = arith.addf %101, %104 : vector<1x16xf32>
    %106 = vector.extract_strided_slice %71 {offsets = [0, 112], sizes = [1, 16], strides = [1, 1]} : vector<1x256xf32> to vector<1x16xf32>
    %107 = arith.addf %103, %106 : vector<1x16xf32>
    %108 = vector.extract_strided_slice %75 {offsets = [0, 112], sizes = [1, 16], strides = [1, 1]} : vector<1x256xf32> to vector<1x16xf32>
    %109 = arith.addf %105, %108 : vector<1x16xf32>
    %110 = vector.extract_strided_slice %71 {offsets = [0, 128], sizes = [1, 16], strides = [1, 1]} : vector<1x256xf32> to vector<1x16xf32>
    %111 = arith.addf %107, %110 : vector<1x16xf32>
    %112 = vector.extract_strided_slice %75 {offsets = [0, 128], sizes = [1, 16], strides = [1, 1]} : vector<1x256xf32> to vector<1x16xf32>
    %113 = arith.addf %109, %112 : vector<1x16xf32>
    %114 = vector.extract_strided_slice %71 {offsets = [0, 144], sizes = [1, 16], strides = [1, 1]} : vector<1x256xf32> to vector<1x16xf32>
    %115 = arith.addf %111, %114 : vector<1x16xf32>
    %116 = vector.extract_strided_slice %75 {offsets = [0, 144], sizes = [1, 16], strides = [1, 1]} : vector<1x256xf32> to vector<1x16xf32>
    %117 = arith.addf %113, %116 : vector<1x16xf32>
    %118 = vector.extract_strided_slice %71 {offsets = [0, 160], sizes = [1, 16], strides = [1, 1]} : vector<1x256xf32> to vector<1x16xf32>
    %119 = arith.addf %115, %118 : vector<1x16xf32>
    %120 = vector.extract_strided_slice %75 {offsets = [0, 160], sizes = [1, 16], strides = [1, 1]} : vector<1x256xf32> to vector<1x16xf32>
    %121 = arith.addf %117, %120 : vector<1x16xf32>
    %122 = vector.extract_strided_slice %71 {offsets = [0, 176], sizes = [1, 16], strides = [1, 1]} : vector<1x256xf32> to vector<1x16xf32>
    %123 = arith.addf %119, %122 : vector<1x16xf32>
    %124 = vector.extract_strided_slice %75 {offsets = [0, 176], sizes = [1, 16], strides = [1, 1]} : vector<1x256xf32> to vector<1x16xf32>
    %125 = arith.addf %121, %124 : vector<1x16xf32>
    %126 = vector.extract_strided_slice %71 {offsets = [0, 192], sizes = [1, 16], strides = [1, 1]} : vector<1x256xf32> to vector<1x16xf32>
    %127 = arith.addf %123, %126 : vector<1x16xf32>
    %128 = vector.extract_strided_slice %75 {offsets = [0, 192], sizes = [1, 16], strides = [1, 1]} : vector<1x256xf32> to vector<1x16xf32>
    %129 = arith.addf %125, %128 : vector<1x16xf32>
    %130 = vector.extract_strided_slice %71 {offsets = [0, 208], sizes = [1, 16], strides = [1, 1]} : vector<1x256xf32> to vector<1x16xf32>
    %131 = arith.addf %127, %130 : vector<1x16xf32>
    %132 = vector.extract_strided_slice %75 {offsets = [0, 208], sizes = [1, 16], strides = [1, 1]} : vector<1x256xf32> to vector<1x16xf32>
    %133 = arith.addf %129, %132 : vector<1x16xf32>
    %134 = vector.extract_strided_slice %71 {offsets = [0, 224], sizes = [1, 16], strides = [1, 1]} : vector<1x256xf32> to vector<1x16xf32>
    %135 = arith.addf %131, %134 : vector<1x16xf32>
    %136 = vector.extract_strided_slice %75 {offsets = [0, 224], sizes = [1, 16], strides = [1, 1]} : vector<1x256xf32> to vector<1x16xf32>
    %137 = arith.addf %133, %136 : vector<1x16xf32>
    %138 = vector.extract_strided_slice %71 {offsets = [0, 240], sizes = [1, 16], strides = [1, 1]} : vector<1x256xf32> to vector<1x16xf32>
    %139 = arith.addf %135, %138 : vector<1x16xf32>
    %140 = vector.extract_strided_slice %75 {offsets = [0, 240], sizes = [1, 16], strides = [1, 1]} : vector<1x256xf32> to vector<1x16xf32>
    %141 = arith.addf %137, %140 : vector<1x16xf32>
    %cst_60 = arith.constant 0.001953125 : f32
    %142 = vector.broadcast %cst_60 : f32 to vector<1x16xf32>
    %143 = arith.mulf %139, %142 : vector<1x16xf32>
    %cst_61 = arith.constant 0.001953125 : f32
    %144 = vector.broadcast %cst_61 : f32 to vector<1x16xf32>
    %145 = arith.mulf %141, %144 : vector<1x16xf32>
    %146 = arith.mulf %143, %143 : vector<1x16xf32>
    %147 = arith.subf %145, %146 : vector<1x16xf32>
    %cst_62 = arith.constant 9.99999974E-6 : f32
    %148 = vector.broadcast %cst_62 : f32 to vector<1x16xf32>
    %149 = arith.addf %147, %148 : vector<1x16xf32>
    %150 = math.rsqrt %149 : vector<1x16xf32>
    %151 = tpu.concatenate %143, %143, %143, %143, %143, %143, %143, %143, %143, %143, %143, %143, %143, %143, %143, %143 in 1 : vector<1x16xf32>, vector<1x16xf32>, vector<1x16xf32>, vector<1x16xf32>, vector<1x16xf32>, vector<1x16xf32>, vector<1x16xf32>, vector<1x16xf32>, vector<1x16xf32>, vector<1x16xf32>, vector<1x16xf32>, vector<1x16xf32>, vector<1x16xf32>, vector<1x16xf32>, vector<1x16xf32>, vector<1x16xf32> -> vector<1x256xf32>
    %152 = tpu.concatenate %150, %150, %150, %150, %150, %150, %150, %150, %150, %150, %150, %150, %150, %150, %150, %150 in 1 : vector<1x16xf32>, vector<1x16xf32>, vector<1x16xf32>, vector<1x16xf32>, vector<1x16xf32>, vector<1x16xf32>, vector<1x16xf32>, vector<1x16xf32>, vector<1x16xf32>, vector<1x16xf32>, vector<1x16xf32>, vector<1x16xf32>, vector<1x16xf32>, vector<1x16xf32>, vector<1x16xf32>, vector<1x16xf32> -> vector<1x256xf32>
    %c0_63 = arith.constant 0 : index
    %c0_64 = arith.constant 0 : index
    %153 = vector.load %arg4[%c0_63, %c0_64] : memref<1x256xf32, #tpu.memory_space<vmem>>, vector<1x256xf32>
    %154 = arith.mulf %153, %152 : vector<1x256xf32>
    %c0_65 = arith.constant 0 : index
    %c0_66 = arith.constant 0 : index
    %155 = vector.load %arg5[%c0_65, %c0_66] : memref<1x256xf32, #tpu.memory_space<vmem>>, vector<1x256xf32>
    %156 = arith.mulf %151, %154 : vector<1x256xf32>
    %157 = arith.subf %155, %156 : vector<1x256xf32>
    %c0_67 = arith.constant 0 : index
    %c0_68 = arith.constant 0 : index
    %c0_69 = arith.constant 0 : index
    %158 = vector.load %arg7[%c0_67, %c0_68, %c0_69] : memref<2x16x256xf32, #tpu.memory_space<vmem>>, vector<1x16x256xf32>
    %159 = vector.shape_cast %158 : vector<1x16x256xf32> to vector<16x256xf32>
    %160 = vector.broadcast %154 : vector<1x256xf32> to vector<16x256xf32>
    %161 = arith.mulf %159, %160 : vector<16x256xf32>
    %162 = vector.broadcast %157 : vector<1x256xf32> to vector<16x256xf32>
    %163 = arith.addf %161, %162 : vector<16x256xf32>
    %c0_70 = arith.constant 0 : index
    %c0_71 = arith.constant 0 : index
    %c0_72 = arith.constant 0 : index
    %164 = vector.load %arg6[%c0_70, %c0_71, %c0_72] : memref<2x16x256xf32, #tpu.memory_space<vmem>>, vector<1x16x256xf32>
    %165 = vector.shape_cast %164 : vector<1x16x256xf32> to vector<16x256xf32>
    %166 = vector.shape_cast %163 : vector<16x256xf32> to vector<1x16x256xf32>
    tpu.vector_store %arg6[%c0_70, %c0_71, %c0_72], %166 {strides = array<i32>} : memref<2x16x256xf32, #tpu.memory_space<vmem>>, vector<1x16x256xf32>,
    %c1_73 = arith.constant 1 : index
    %c0_74 = arith.constant 0 : index
    %c0_75 = arith.constant 0 : index
    %167 = vector.load %arg7[%c1_73, %c0_74, %c0_75] : memref<2x16x256xf32, #tpu.memory_space<vmem>>, vector<1x16x256xf32>
    %168 = vector.shape_cast %167 : vector<1x16x256xf32> to vector<16x256xf32>
    %169 = vector.broadcast %154 : vector<1x256xf32> to vector<16x256xf32>
    %170 = arith.mulf %168, %169 : vector<16x256xf32>
    %171 = vector.broadcast %157 : vector<1x256xf32> to vector<16x256xf32>
    %172 = arith.addf %170, %171 : vector<16x256xf32>
    %c1_76 = arith.constant 1 : index
    %c0_77 = arith.constant 0 : index
    %c0_78 = arith.constant 0 : index
    %173 = vector.load %arg6[%c1_76, %c0_77, %c0_78] : memref<2x16x256xf32, #tpu.memory_space<vmem>>, vector<1x16x256xf32>
    %174 = vector.shape_cast %173 : vector<1x16x256xf32> to vector<16x256xf32>
    %175 = vector.shape_cast %172 : vector<16x256xf32> to vector<1x16x256xf32>
    tpu.vector_store %arg6[%c1_76, %c0_77, %c0_78], %175 {strides = array<i32>} : memref<2x16x256xf32, #tpu.memory_space<vmem>>, vector<1x16x256xf32>,
    return
  }
  func.func @transform_0(%arg0: i32) -> (i32, i32, i32) {
    %c0_i32 = arith.constant 0 : i32
    %c0_i32_0 = arith.constant 0 : i32
    %c0_i32_1 = arith.constant 0 : i32
    %c0_i32_2 = arith.constant 0 : i32
    return %c0_i32, %c0_i32_0, %c0_i32_1 : i32, i32, i32
  }
  func.func @transform_1(%arg0: i32) -> (i32, i32, i32) {
    %c0_i32 = arith.constant 0 : i32
    %c0_i32_0 = arith.constant 0 : i32
    %c0_i32_1 = arith.constant 0 : i32
    %c0_i32_2 = arith.constant 0 : i32
    return %c0_i32, %c0_i32_0, %c0_i32_1 : i32, i32, i32
  }
  func.func @transform_2(%arg0: i32) -> (i32, i32) {
    %c0_i32 = arith.constant 0 : i32
    %c0_i32_0 = arith.constant 0 : i32
    %c0_i32_1 = arith.constant 0 : i32
    return %c0_i32, %c0_i32_0 : i32, i32
  }
  func.func @transform_3(%arg0: i32) -> (i32, i32) {
    %c0_i32 = arith.constant 0 : i32
    %c0_i32_0 = arith.constant 0 : i32
    %c0_i32_1 = arith.constant 0 : i32
    return %c0_i32, %c0_i32_0 : i32, i32
  }
  func.func @transform_4(%arg0: i32) -> (i32, i32) {
    %c0_i32 = arith.constant 0 : i32
    %c0_i32_0 = arith.constant 0 : i32
    %c0_i32_1 = arith.constant 0 : i32
    return %c0_i32, %c0_i32_0 : i32, i32
  }
  func.func @transform_5(%arg0: i32) -> (i32, i32, i32) {
    %c0_i32 = arith.constant 0 : i32
    %c0_i32_0 = arith.constant 0 : i32
    %c0_i32_1 = arith.constant 0 : i32
    %c0_i32_2 = arith.constant 0 : i32
    return %c0_i32, %c0_i32_0, %c0_i32_1 : i32, i32, i32
  }
}

</mosaic_0001>

<llo_original>
// kernel: conv_bridge_forward.1
$region0: #{conv_bridge_forward.1}
  #allocation0 [shape = 'u32[]', space=smem, size = 0x4, offset = 0x4, fixed_abs, tag = 'smem constant byte address 0x4 - core index']
  #allocation1 [shape = 'u32[72,128]{1,0:T(1,128)}', space=vmem, size = 0x9000, scoped, tag = 'internal scratch']
  #allocation2 [shape = 'f32[2,16,256]{2,1,0:T(8,128)}', space=vmem, size = 0x8000, scoped, tag = 'scratch operand']
  %s0 = inlined_call_operand.vmem [shape: f32[2,18,288], index: 0, kind: input, shape index: {}]
  %s1 = inlined_call_operand.vmem [shape: bf16[3,288,256], index: 1, kind: input, shape index: {}]
  %s2 = inlined_call_operand.vmem [shape: f32[1,256], index: 2, kind: input, shape index: {}]
  %s3 = inlined_call_operand.vmem [shape: f32[1,256], index: 3, kind: input, shape index: {}]
  %s4 = inlined_call_operand.vmem [shape: f32[1,256], index: 4, kind: input, shape index: {}]
  %s5 = inlined_call_operand.vmem [shape: f32[2,16,256], index: 5, kind: output, shape index: {}]
  %s6 = sld [smem:[#allocation0]]
  $region30: #{conv_bridge_forward.1} parent=0
    _
  %s8 = ssub.s32 1, %s6
  %s9 = scalar_select 0, %s8, %s6
  // Predicated region
  $region2: #{conv_bridge_forward.1} parent=0 // pred_check
    _
  $region3: #{conv_bridge_forward.1} parent=0 // pred_check_branch
    %11 = sbr.rel (0) target = $region5
  $region4: #{conv_bridge_forward.1} parent=0 // pred_region
    _
  $region5: #{conv_bridge_forward.1} parent=0 // pred_fallthru
    _
  // Predicated region
  $region6: #{conv_bridge_forward.1} parent=0 // pred_check
    _
  $region7: #{conv_bridge_forward.1} parent=0 // pred_check_branch
    %13 = sbr.rel (0) target = $region9
  $region8: #{conv_bridge_forward.1} parent=0 // pred_region
    _
  $region9: #{conv_bridge_forward.1} parent=0 // pred_fallthru
    _
  // Predicated region
  $region10: #{conv_bridge_forward.1} parent=0 // pred_check
    _
  $region11: #{conv_bridge_forward.1} parent=0 // pred_check_branch
    %15 = sbr.rel (0) target = $region13
  $region12: #{conv_bridge_forward.1} parent=0 // pred_region
    _
  $region13: #{conv_bridge_forward.1} parent=0 // pred_fallthru
    _
  // Predicated region
  $region14: #{conv_bridge_forward.1} parent=0 // pred_check
    _
  $region15: #{conv_bridge_forward.1} parent=0 // pred_check_branch
    %17 = sbr.rel (0) target = $region17
  $region16: #{conv_bridge_forward.1} parent=0 // pred_region
    _
  $region17: #{conv_bridge_forward.1} parent=0 // pred_fallthru
    _
  // Predicated region
  $region18: #{conv_bridge_forward.1} parent=0 // pred_check
    _
  $region19: #{conv_bridge_forward.1} parent=0 // pred_check_branch
    %19 = sbr.rel (0) target = $region21
  $region20: #{conv_bridge_forward.1} parent=0 // pred_region
    _
  $region21: #{conv_bridge_forward.1} parent=0 // pred_fallthru
    _
  %v21 = vld [vmem:[%s0] sm:$0xff]
  %v22 = vld [vmem:[%s0 + $0x8] sm:$0xff]
  %v23 = vld [vmem:[%s0 + $0x10] sm:$0xff]
  %v24 = vld [vmem:[%s0 + $0x18] sm:$0xff]
  %v25 = vld [vmem:[%s0 + $0x20] sm:$0xff]
  %v26 = vld [vmem:[%s0 + $0x28] sm:$0xff]
  %v27 = vpack.c.bf16 %v24, %v21
  %v28 = vpack.c.bf16 %v25, %v22
  %v29 = vpack.c.bf16 %v26, %v23
  %v30 = vld [vmem:[%s1] sm:$0xff]
  %v31 = vld [vmem:[%s1 + $0x8] sm:$0xff]
  %v32 = vld [vmem:[%s1 + $0x10] sm:$0xff]
  %v33 = vld [vmem:[%s1 + $0x18] sm:$0xff]
  %v34 = vld [vmem:[%s1 + $0x20] sm:$0xff]
  %v35 = vld [vmem:[%s1 + $0x28] sm:$0xff]
  %v36 = vld [vmem:[%s1 + $0x30] sm:$0xff]
  %v37 = vld [vmem:[%s1 + $0x38] sm:$0xff]
  %v38 = vld [vmem:[%s1 + $0x40] sm:$0xff]
  %v39 = vld [vmem:[%s1 + $0x48] sm:$0xff]
  %v40 = vld [vmem:[%s1 + $0x50] sm:$0xff]
  %v41 = vld [vmem:[%s1 + $0x58] sm:$0xff]
  %v42 = vld [vmem:[%s1 + $0x60] sm:$0xff]
  %v43 = vld [vmem:[%s1 + $0x68] sm:$0xff]
  %v44 = vld [vmem:[%s1 + $0x70] sm:$0xff]
  %v45 = vld [vmem:[%s1 + $0x78] sm:$0xff]
  %v46 = vld [vmem:[%s1 + $0x80] sm:$0xff]
  %v47 = vld [vmem:[%s1 + $0x88] sm:$0xff]
  %v48 = vld [vmem:[%s1 + $0x90] sm:$0xff]
  %v49 = vld [vmem:[%s1 + $0x98] sm:$0xff]
  %v50 = vld [vmem:[%s1 + $0xa0] sm:$0xff]
  %v51 = vld [vmem:[%s1 + $0xa8] sm:$0xff]
  %v52 = vld [vmem:[%s1 + $0xb0] sm:$0xff]
  %v53 = vld [vmem:[%s1 + $0xb8] sm:$0xff]
  %v54 = vld [vmem:[%s1 + $0xc0] sm:$0xff]
  %v55 = vld [vmem:[%s1 + $0xc8] sm:$0xff]
  %v56 = vld [vmem:[%s1 + $0xd0] sm:$0xff]
  %v57 = vld [vmem:[%s1 + $0xd8] sm:$0xff]
  %v58 = vld [vmem:[%s1 + $0xe0] sm:$0xff]
  %v59 = vld [vmem:[%s1 + $0xe8] sm:$0xff]
  %v60 = vld [vmem:[%s1 + $0xf0] sm:$0xff]
  %v61 = vld [vmem:[%s1 + $0xf8] sm:$0xff]
  %v62 = vld [vmem:[%s1 + $0x100] sm:$0xff]
  %v63 = vld [vmem:[%s1 + $0x108] sm:$0xff]
  %v64 = vld [vmem:[%s1 + $0x110] sm:$0xff]
  %v65 = vld [vmem:[%s1 + $0x118] sm:$0xff]
  %v66 = vld [vmem:[%s0] sm:$0xfe]
  %v67 = vld [vmem:[%s0 + $0x8] sm:$0xfe]
  %v68 = vld [vmem:[%s0 + $0x10] sm:$0xfe]
  %v69 = vld [vmem:[%s0 + $0x30] sm:$0x1]
  %v70 = vld [vmem:[%s0 + $0x38] sm:$0x1]
  %v71 = vld [vmem:[%s0 + $0x40] sm:$0x1]
  %v72 = vpack.c.bf16 %v24, %v66
  %v73 = vpack.c.bf16 %v25, %v67
  %v74 = vpack.c.bf16 %v26, %v68
  %v75 = vpack.c.bf16 %v69, %v69
  %v76 = vpack.c.bf16 %v70, %v70
  %v77 = vpack.c.bf16 %v71, %v71
  %s78 = scalar_lea.vmem %s1, 288
  %v79 = vld [vmem:[%s78] sm:$0xff]
  %v80 = vld [vmem:[%s78 + $0x8] sm:$0xff]
  %v81 = vld [vmem:[%s78 + $0x10] sm:$0xff]
  %v82 = vld [vmem:[%s78 + $0x18] sm:$0xff]
  %v83 = vld [vmem:[%s78 + $0x20] sm:$0xff]
  %v84 = vld [vmem:[%s78 + $0x28] sm:$0xff]
  %v85 = vld [vmem:[%s78 + $0x30] sm:$0xff]
  %v86 = vld [vmem:[%s78 + $0x38] sm:$0xff]
  %v87 = vld [vmem:[%s78 + $0x40] sm:$0xff]
  %v88 = vld [vmem:[%s78 + $0x48] sm:$0xff]
  %v89 = vld [vmem:[%s78 + $0x50] sm:$0xff]
  %v90 = vld [vmem:[%s78 + $0x58] sm:$0xff]
  %v91 = vld [vmem:[%s78 + $0x60] sm:$0xff]
  %v92 = vld [vmem:[%s78 + $0x68] sm:$0xff]
  %v93 = vld [vmem:[%s78 + $0x70] sm:$0xff]
  %v94 = vld [vmem:[%s78 + $0x78] sm:$0xff]
  %v95 = vld [vmem:[%s78 + $0x80] sm:$0xff]
  %v96 = vld [vmem:[%s78 + $0x88] sm:$0xff]
  %v97 = vld [vmem:[%s78 + $0x90] sm:$0xff]
  %v98 = vld [vmem:[%s78 + $0x98] sm:$0xff]
  %v99 = vld [vmem:[%s78 + $0xa0] sm:$0xff]
  %v100 = vld [vmem:[%s78 + $0xa8] sm:$0xff]
  %v101 = vld [vmem:[%s78 + $0xb0] sm:$0xff]
  %v102 = vld [vmem:[%s78 + $0xb8] sm:$0xff]
  %v103 = vld [vmem:[%s78 + $0xc0] sm:$0xff]
  %v104 = vld [vmem:[%s78 + $0xc8] sm:$0xff]
  %v105 = vld [vmem:[%s78 + $0xd0] sm:$0xff]
  %v106 = vld [vmem:[%s78 + $0xd8] sm:$0xff]
  %v107 = vld [vmem:[%s78 + $0xe0] sm:$0xff]
  %v108 = vld [vmem:[%s78 + $0xe8] sm:$0xff]
  %v109 = vld [vmem:[%s78 + $0xf0] sm:$0xff]
  %v110 = vld [vmem:[%s78 + $0xf8] sm:$0xff]
  %v111 = vld [vmem:[%s78 + $0x100] sm:$0xff]
  %v112 = vld [vmem:[%s78 + $0x108] sm:$0xff]
  %v113 = vld [vmem:[%s78 + $0x110] sm:$0xff]
  %v114 = vld [vmem:[%s78 + $0x118] sm:$0xff]
  %vm115 = vsmask.f32 7424
  %v117 = vshrl.u32 %v72, 16
  %v119 = vshll.u32 %v72, 16
  %v121 = vrot.slane %v119, 1
  %v122 = vor.u32 %v117, %v121
  %v124 = vshll.u32 %v75, 16
  %v126 = vrot.slane %v124, 1
  %v127 = vsel %vm115, %v122, %v126
  %v129 = vshrl.u32 %v73, 16
  %v131 = vshll.u32 %v73, 16
  %v133 = vrot.slane %v131, 1
  %v134 = vor.u32 %v129, %v133
  %v136 = vshll.u32 %v76, 16
  %v138 = vrot.slane %v136, 1
  %v139 = vsel %vm115, %v134, %v138
  %v141 = vshrl.u32 %v74, 16
  %v143 = vshll.u32 %v74, 16
  %v145 = vrot.slane %v143, 1
  %v146 = vor.u32 %v141, %v145
  %v148 = vshll.u32 %v77, 16
  %v150 = vrot.slane %v148, 1
  %v151 = vsel %vm115, %v146, %v150
  %v190 = vunpack.c.l.b16 %v79
  %v191 = vunpack.c.h.b16 %v79
  %v192 = vunpack.c.l.b16 %v80
  %v193 = vunpack.c.h.b16 %v80
  %v194 = vunpack.c.l.b16 %v81
  %v195 = vunpack.c.h.b16 %v81
  %v196 = vunpack.c.l.b16 %v82
  %v197 = vunpack.c.h.b16 %v82
  %v198 = vunpack.c.l.b16 %v83
  %v199 = vunpack.c.h.b16 %v83
  %v200 = vunpack.c.l.b16 %v84
  %v201 = vunpack.c.h.b16 %v84
  %v202 = vunpack.c.l.b16 %v85
  %v203 = vunpack.c.h.b16 %v85
  %v204 = vunpack.c.l.b16 %v86
  %v205 = vunpack.c.h.b16 %v86
  %v206 = vunpack.c.l.b16 %v87
  %v207 = vunpack.c.h.b16 %v87
  %v208 = vunpack.c.l.b16 %v88
  %v209 = vunpack.c.h.b16 %v88
  %v210 = vunpack.c.l.b16 %v89
  %v211 = vunpack.c.h.b16 %v89
  %v212 = vunpack.c.l.b16 %v90
  %v213 = vunpack.c.h.b16 %v90
  %v214 = vunpack.c.l.b16 %v91
  %v215 = vunpack.c.h.b16 %v91
  %v216 = vunpack.c.l.b16 %v92
  %v217 = vunpack.c.h.b16 %v92
  %v218 = vunpack.c.l.b16 %v93
  %v219 = vunpack.c.h.b16 %v93
  %v220 = vunpack.c.l.b16 %v94
  %v221 = vunpack.c.h.b16 %v94
  %v222 = vunpack.c.l.b16 %v95
  %v223 = vunpack.c.h.b16 %v95
  %v224 = vunpack.c.l.b16 %v96
  %v225 = vunpack.c.h.b16 %v96
  %v226 = vunpack.c.l.b16 %v97
  %v227 = vunpack.c.h.b16 %v97
  %v228 = vunpack.c.l.b16 %v98
  %v229 = vunpack.c.h.b16 %v98
  %v230 = vunpack.c.l.b16 %v99
  %v231 = vunpack.c.h.b16 %v99
  %v232 = vunpack.c.l.b16 %v100
  %v233 = vunpack.c.h.b16 %v100
  %v234 = vunpack.c.l.b16 %v101
  %v235 = vunpack.c.h.b16 %v101
  %v236 = vunpack.c.l.b16 %v102
  %v237 = vunpack.c.h.b16 %v102
  %v238 = vunpack.c.l.b16 %v103
  %v239 = vunpack.c.h.b16 %v103
  %v240 = vunpack.c.l.b16 %v104
  %v241 = vunpack.c.h.b16 %v104
  %v242 = vunpack.c.l.b16 %v105
  %v243 = vunpack.c.h.b16 %v105
  %v244 = vunpack.c.l.b16 %v106
  %v245 = vunpack.c.h.b16 %v106
  %v246 = vunpack.c.l.b16 %v107
  %v247 = vunpack.c.h.b16 %v107
  %v248 = vunpack.c.l.b16 %v108
  %v249 = vunpack.c.h.b16 %v108
  %v250 = vunpack.c.l.b16 %v109
  %v251 = vunpack.c.h.b16 %v109
  %v252 = vunpack.c.l.b16 %v110
  %v253 = vunpack.c.h.b16 %v110
  %v254 = vunpack.c.l.b16 %v111
  %v255 = vunpack.c.h.b16 %v111
  %v256 = vunpack.c.l.b16 %v112
  %v257 = vunpack.c.h.b16 %v112
  %v258 = vunpack.c.l.b16 %v113
  %v259 = vunpack.c.h.b16 %v113
  %v260 = vunpack.c.l.b16 %v114
  %v261 = vunpack.c.h.b16 %v114
  %v262 = vpack.c.b16 %v192, %v190
  %v263 = vpack.c.b16 %v193, %v191
  %v264 = vpack.c.b16 %v196, %v194
  %v265 = vpack.c.b16 %v197, %v195
  %v266 = vpack.c.b16 %v200, %v198
  %v267 = vpack.c.b16 %v201, %v199
  %v268 = vpack.c.b16 %v204, %v202
  %v269 = vpack.c.b16 %v205, %v203
  %v270 = vpack.c.b16 %v208, %v206
  %v271 = vpack.c.b16 %v209, %v207
  %v272 = vpack.c.b16 %v212, %v210
  %v273 = vpack.c.b16 %v213, %v211
  %v274 = vpack.c.b16 %v216, %v214
  %v275 = vpack.c.b16 %v217, %v215
  %v276 = vpack.c.b16 %v220, %v218
  %v277 = vpack.c.b16 %v221, %v219
  %v278 = vpack.c.b16 %v224, %v222
  %v279 = vpack.c.b16 %v225, %v223
  %v280 = vpack.c.b16 %v228, %v226
  %v281 = vpack.c.b16 %v229, %v227
  %v282 = vpack.c.b16 %v232, %v230
  %v283 = vpack.c.b16 %v233, %v231
  %v284 = vpack.c.b16 %v236, %v234
  %v285 = vpack.c.b16 %v237, %v235
  %v286 = vpack.c.b16 %v240, %v238
  %v287 = vpack.c.b16 %v241, %v239
  %v288 = vpack.c.b16 %v244, %v242
  %v289 = vpack.c.b16 %v245, %v243
  %v290 = vpack.c.b16 %v248, %v246
  %v291 = vpack.c.b16 %v249, %v247
  %v292 = vpack.c.b16 %v252, %v250
  %v293 = vpack.c.b16 %v253, %v251
  %v294 = vpack.c.b16 %v256, %v254
  %v295 = vpack.c.b16 %v257, %v255
  %v296 = vpack.c.b16 %v260, %v258
  %v297 = vpack.c.b16 %v261, %v259
  %vm334 = vcmask 261120
  %v336 = vsel %vm334, %v151, 0
  %338 = vmatpush.bf16.msra.mxu0 %v276
  %339 = vmatpush.bf16.msra.mxu0 %v274
  %340 = vmatpush.bf16.msra.mxu0 %v272
  %341 = vmatpush.bf16.msra.mxu0 %v270
  %342 = vmatpush.bf16.msra.mxu0 %v268
  %343 = vmatpush.bf16.msra.mxu0 %v266
  %344 = vmatpush.bf16.msra.mxu0 %v264
  %345 = vmatpush.bf16.msra.mxu0 %v262
  %346 = vmatmul.bf16.gmra.mxu0 %v127
  %v347 = vpop.f32.mrf.mxu0
  %v348 = vadd.f32 0.0, %v347
  %v349 = vpop.f32.mrf.mxu0
  %v350 = vadd.f32 0.0, %v349
  %351 = vdwg.mxu0
  %352 = vmatpush.bf16.msra.mxu0 %v292
  %353 = vmatpush.bf16.msra.mxu0 %v290
  %354 = vmatpush.bf16.msra.mxu0 %v288
  %355 = vmatpush.bf16.msra.mxu0 %v286
  %356 = vmatpush.bf16.msra.mxu0 %v284
  %357 = vmatpush.bf16.msra.mxu0 %v282
  %358 = vmatpush.bf16.msra.mxu0 %v280
  %359 = vmatpush.bf16.msra.mxu0 %v278
  %360 = vmatmul.bf16.gmra.mxu0 %v139
  %v361 = vpop.f32.mrf.mxu0
  %v362 = vadd.f32 %v348, %v361
  %v363 = vpop.f32.mrf.mxu0
  %v364 = vadd.f32 %v350, %v363
  %365 = vdwg.mxu0
  %366 = vmatpush.bf16.msra.mxu0 0
  %367 = vmatpush.bf16.msra.mxu0 0
  %368 = vmatpush.bf16.msra.mxu0 0
  %369 = vmatpush.bf16.msra.mxu0 0
  %370 = vmatpush.bf16.msra.mxu0 0
  %371 = vmatpush.bf16.msra.mxu0 0
  %372 = vmatpush.bf16.msra.mxu0 %v296
  %373 = vmatpush.bf16.msra.mxu0 %v294
  %374 = vmatmul.bf16.gmra.mxu0 %v336
  %v375 = vpop.f32.mrf.mxu0
  %v376 = vadd.f32 %v362, %v375
  %v377 = vpop.f32.mrf.mxu0
  %v378 = vadd.f32 %v364, %v377
  %379 = vdwg.mxu0
  %380 = vmatpush.bf16.msra.mxu0 %v277
  %381 = vmatpush.bf16.msra.mxu0 %v275
  %382 = vmatpush.bf16.msra.mxu0 %v273
  %383 = vmatpush.bf16.msra.mxu0 %v271
  %384 = vmatpush.bf16.msra.mxu0 %v269
  %385 = vmatpush.bf16.msra.mxu0 %v267
  %386 = vmatpush.bf16.msra.mxu0 %v265
  %387 = vmatpush.bf16.msra.mxu0 %v263
  %388 = vmatmul.bf16.gmra.mxu0 %v127
  %v389 = vpop.f32.mrf.mxu0
  %v390 = vadd.f32 0.0, %v389
  %v391 = vpop.f32.mrf.mxu0
  %v392 = vadd.f32 0.0, %v391
  %393 = vdwg.mxu0
  %394 = vmatpush.bf16.msra.mxu0 %v293
  %395 = vmatpush.bf16.msra.mxu0 %v291
  %396 = vmatpush.bf16.msra.mxu0 %v289
  %397 = vmatpush.bf16.msra.mxu0 %v287
  %398 = vmatpush.bf16.msra.mxu0 %v285
  %399 = vmatpush.bf16.msra.mxu0 %v283
  %400 = vmatpush.bf16.msra.mxu0 %v281
  %401 = vmatpush.bf16.msra.mxu0 %v279
  %402 = vmatmul.bf16.gmra.mxu0 %v139
  %v403 = vpop.f32.mrf.mxu0
  %v404 = vadd.f32 %v390, %v403
  %v405 = vpop.f32.mrf.mxu0
  %v406 = vadd.f32 %v392, %v405
  %407 = vdwg.mxu0
  %408 = vmatpush.bf16.msra.mxu0 0
  %409 = vmatpush.bf16.msra.mxu0 0
  %410 = vmatpush.bf16.msra.mxu0 0
  %411 = vmatpush.bf16.msra.mxu0 0
  %412 = vmatpush.bf16.msra.mxu0 0
  %413 = vmatpush.bf16.msra.mxu0 0
  %414 = vmatpush.bf16.msra.mxu0 %v297
  %415 = vmatpush.bf16.msra.mxu0 %v295
  %416 = vmatmul.bf16.gmra.mxu0 %v336
  %v417 = vpop.f32.mrf.mxu0
  %v418 = vadd.f32 %v404, %v417
  %v419 = vpop.f32.mrf.mxu0
  %v420 = vadd.f32 %v406, %v419
  %421 = vdwg.mxu0
  %v458 = vunpack.c.l.b16 %v30
  %v459 = vunpack.c.h.b16 %v30
  %v460 = vunpack.c.l.b16 %v31
  %v461 = vunpack.c.h.b16 %v31
  %v462 = vunpack.c.l.b16 %v32
  %v463 = vunpack.c.h.b16 %v32
  %v464 = vunpack.c.l.b16 %v33
  %v465 = vunpack.c.h.b16 %v33
  %v466 = vunpack.c.l.b16 %v34
  %v467 = vunpack.c.h.b16 %v34
  %v468 = vunpack.c.l.b16 %v35
  %v469 = vunpack.c.h.b16 %v35
  %v470 = vunpack.c.l.b16 %v36
  %v471 = vunpack.c.h.b16 %v36
  %v472 = vunpack.c.l.b16 %v37
  %v473 = vunpack.c.h.b16 %v37
  %v474 = vunpack.c.l.b16 %v38
  %v475 = vunpack.c.h.b16 %v38
  %v476 = vunpack.c.l.b16 %v39
  %v477 = vunpack.c.h.b16 %v39
  %v478 = vunpack.c.l.b16 %v40
  %v479 = vunpack.c.h.b16 %v40
  %v480 = vunpack.c.l.b16 %v41
  %v481 = vunpack.c.h.b16 %v41
  %v482 = vunpack.c.l.b16 %v42
  %v483 = vunpack.c.h.b16 %v42
  %v484 = vunpack.c.l.b16 %v43
  %v485 = vunpack.c.h.b16 %v43
  %v486 = vunpack.c.l.b16 %v44
  %v487 = vunpack.c.h.b16 %v44
  %v488 = vunpack.c.l.b16 %v45
  %v489 = vunpack.c.h.b16 %v45
  %v490 = vunpack.c.l.b16 %v46
  %v491 = vunpack.c.h.b16 %v46
  %v492 = vunpack.c.l.b16 %v47
  %v493 = vunpack.c.h.b16 %v47
  %v494 = vunpack.c.l.b16 %v48
  %v495 = vunpack.c.h.b16 %v48
  %v496 = vunpack.c.l.b16 %v49
  %v497 = vunpack.c.h.b16 %v49
  %v498 = vunpack.c.l.b16 %v50
  %v499 = vunpack.c.h.b16 %v50
  %v500 = vunpack.c.l.b16 %v51
  %v501 = vunpack.c.h.b16 %v51
  %v502 = vunpack.c.l.b16 %v52
  %v503 = vunpack.c.h.b16 %v52
  %v504 = vunpack.c.l.b16 %v53
  %v505 = vunpack.c.h.b16 %v53
  %v506 = vunpack.c.l.b16 %v54
  %v507 = vunpack.c.h.b16 %v54
  %v508 = vunpack.c.l.b16 %v55
  %v509 = vunpack.c.h.b16 %v55
  %v510 = vunpack.c.l.b16 %v56
  %v511 = vunpack.c.h.b16 %v56
  %v512 = vunpack.c.l.b16 %v57
  %v513 = vunpack.c.h.b16 %v57
  %v514 = vunpack.c.l.b16 %v58
  %v515 = vunpack.c.h.b16 %v58
  %v516 = vunpack.c.l.b16 %v59
  %v517 = vunpack.c.h.b16 %v59
  %v518 = vunpack.c.l.b16 %v60
  %v519 = vunpack.c.h.b16 %v60
  %v520 = vunpack.c.l.b16 %v61
  %v521 = vunpack.c.h.b16 %v61
  %v522 = vunpack.c.l.b16 %v62
  %v523 = vunpack.c.h.b16 %v62
  %v524 = vunpack.c.l.b16 %v63
  %v525 = vunpack.c.h.b16 %v63
  %v526 = vunpack.c.l.b16 %v64
  %v527 = vunpack.c.h.b16 %v64
  %v528 = vunpack.c.l.b16 %v65
  %v529 = vunpack.c.h.b16 %v65
  %v530 = vpack.c.b16 %v460, %v458
  %v531 = vpack.c.b16 %v461, %v459
  %v532 = vpack.c.b16 %v464, %v462
  %v533 = vpack.c.b16 %v465, %v463
  %v534 = vpack.c.b16 %v468, %v466
  %v535 = vpack.c.b16 %v469, %v467
  %v536 = vpack.c.b16 %v472, %v470
  %v537 = vpack.c.b16 %v473, %v471
  %v538 = vpack.c.b16 %v476, %v474
  %v539 = vpack.c.b16 %v477, %v475
  %v540 = vpack.c.b16 %v480, %v478
  %v541 = vpack.c.b16 %v481, %v479
  %v542 = vpack.c.b16 %v484, %v482
  %v543 = vpack.c.b16 %v485, %v483
  %v544 = vpack.c.b16 %v488, %v486
  %v545 = vpack.c.b16 %v489, %v487
  %v546 = vpack.c.b16 %v492, %v490
  %v547 = vpack.c.b16 %v493, %v491
  %v548 = vpack.c.b16 %v496, %v494
  %v549 = vpack.c.b16 %v497, %v495
  %v550 = vpack.c.b16 %v500, %v498
  %v551 = vpack.c.b16 %v501, %v499
  %v552 = vpack.c.b16 %v504, %v502
  %v553 = vpack.c.b16 %v505, %v503
  %v554 = vpack.c.b16 %v508, %v506
  %v555 = vpack.c.b16 %v509, %v507
  %v556 = vpack.c.b16 %v512, %v510
  %v557 = vpack.c.b16 %v513, %v511
  %v558 = vpack.c.b16 %v516, %v514
  %v559 = vpack.c.b16 %v517, %v515
  %v560 = vpack.c.b16 %v520, %v518
  %v561 = vpack.c.b16 %v521, %v519
  %v562 = vpack.c.b16 %v524, %v522
  %v563 = vpack.c.b16 %v525, %v523
  %v564 = vpack.c.b16 %v528, %v526
  %v565 = vpack.c.b16 %v529, %v527
  %v603 = vsel %vm334, %v29, 0
  %605 = vmatpush.bf16.msra.mxu0 %v544
  %606 = vmatpush.bf16.msra.mxu0 %v542
  %607 = vmatpush.bf16.msra.mxu0 %v540
  %608 = vmatpush.bf16.msra.mxu0 %v538
  %609 = vmatpush.bf16.msra.mxu0 %v536
  %610 = vmatpush.bf16.msra.mxu0 %v534
  %611 = vmatpush.bf16.msra.mxu0 %v532
  %612 = vmatpush.bf16.msra.mxu0 %v530
  %613 = vmatmul.bf16.gmra.mxu0 %v27
  %v614 = vpop.f32.mrf.mxu0
  %v615 = vadd.f32 %v376, %v614
  %v616 = vpop.f32.mrf.mxu0
  %v617 = vadd.f32 %v378, %v616
  %618 = vdwg.mxu0
  %619 = vmatpush.bf16.msra.mxu0 %v560
  %620 = vmatpush.bf16.msra.mxu0 %v558
  %621 = vmatpush.bf16.msra.mxu0 %v556
  %622 = vmatpush.bf16.msra.mxu0 %v554
  %623 = vmatpush.bf16.msra.mxu0 %v552
  %624 = vmatpush.bf16.msra.mxu0 %v550
  %625 = vmatpush.bf16.msra.mxu0 %v548
  %626 = vmatpush.bf16.msra.mxu0 %v546
  %627 = vmatmul.bf16.gmra.mxu0 %v28
  %v628 = vpop.f32.mrf.mxu0
  %v629 = vadd.f32 %v615, %v628
  %v630 = vpop.f32.mrf.mxu0
  %v631 = vadd.f32 %v617, %v630
  %632 = vdwg.mxu0
  %633 = vmatpush.bf16.msra.mxu0 0
  %634 = vmatpush.bf16.msra.mxu0 0
  %635 = vmatpush.bf16.msra.mxu0 0
  %636 = vmatpush.bf16.msra.mxu0 0
  %637 = vmatpush.bf16.msra.mxu0 0
  %638 = vmatpush.bf16.msra.mxu0 0
  %639 = vmatpush.bf16.msra.mxu0 %v564
  %640 = vmatpush.bf16.msra.mxu0 %v562
  %641 = vmatmul.bf16.gmra.mxu0 %v603
  %v642 = vpop.f32.mrf.mxu0
  %v643 = vadd.f32 %v629, %v642
  %v644 = vpop.f32.mrf.mxu0
  %v645 = vadd.f32 %v631, %v644
  %646 = vdwg.mxu0
  %647 = vmatpush.bf16.msra.mxu0 %v545
  %648 = vmatpush.bf16.msra.mxu0 %v543
  %649 = vmatpush.bf16.msra.mxu0 %v541
  %650 = vmatpush.bf16.msra.mxu0 %v539
  %651 = vmatpush.bf16.msra.mxu0 %v537
  %652 = vmatpush.bf16.msra.mxu0 %v535
  %653 = vmatpush.bf16.msra.mxu0 %v533
  %654 = vmatpush.bf16.msra.mxu0 %v531
  %655 = vmatmul.bf16.gmra.mxu0 %v27
  %v656 = vpop.f32.mrf.mxu0
  %v657 = vadd.f32 %v418, %v656
  %v658 = vpop.f32.mrf.mxu0
  %v659 = vadd.f32 %v420, %v658
  %660 = vdwg.mxu0
  %661 = vmatpush.bf16.msra.mxu0 %v561
  %662 = vmatpush.bf16.msra.mxu0 %v559
  %663 = vmatpush.bf16.msra.mxu0 %v557
  %664 = vmatpush.bf16.msra.mxu0 %v555
  %665 = vmatpush.bf16.msra.mxu0 %v553
  %666 = vmatpush.bf16.msra.mxu0 %v551
  %667 = vmatpush.bf16.msra.mxu0 %v549
  %668 = vmatpush.bf16.msra.mxu0 %v547
  %669 = vmatmul.bf16.gmra.mxu0 %v28
  %v670 = vpop.f32.mrf.mxu0
  %v671 = vadd.f32 %v657, %v670
  %v672 = vpop.f32.mrf.mxu0
  %v673 = vadd.f32 %v659, %v672
  %674 = vdwg.mxu0
  %675 = vmatpush.bf16.msra.mxu0 0
  %676 = vmatpush.bf16.msra.mxu0 0
  %677 = vmatpush.bf16.msra.mxu0 0
  %678 = vmatpush.bf16.msra.mxu0 0
  %679 = vmatpush.bf16.msra.mxu0 0
  %680 = vmatpush.bf16.msra.mxu0 0
  %681 = vmatpush.bf16.msra.mxu0 %v565
  %682 = vmatpush.bf16.msra.mxu0 %v563
  %683 = vmatmul.bf16.gmra.mxu0 %v603
  %v684 = vpop.f32.mrf.mxu0
  %v685 = vadd.f32 %v671, %v684
  %v686 = vpop.f32.mrf.mxu0
  %v687 = vadd.f32 %v673, %v686
  %688 = vdwg.mxu0
  %v689 = vld [vmem:[%s0] sm:$0xfc]
  %v690 = vld [vmem:[%s0 + $0x8] sm:$0xfc]
  %v691 = vld [vmem:[%s0 + $0x10] sm:$0xfc]
  %v692 = vld [vmem:[%s0 + $0x30] sm:$0x3]
  %v693 = vld [vmem:[%s0 + $0x38] sm:$0x3]
  %v694 = vld [vmem:[%s0 + $0x40] sm:$0x3]
  %v695 = vpack.c.bf16 %v24, %v689
  %v696 = vpack.c.bf16 %v25, %v690
  %v697 = vpack.c.bf16 %v26, %v691
  %v698 = vpack.c.bf16 %v692, %v692
  %v699 = vpack.c.bf16 %v693, %v693
  %v700 = vpack.c.bf16 %v694, %v694
  %s701 = scalar_lea.vmem %s1, 576
  %v702 = vld [vmem:[%s701] sm:$0xff]
  %v703 = vld [vmem:[%s701 + $0x8] sm:$0xff]
  %v704 = vld [vmem:[%s701 + $0x10] sm:$0xff]
  %v705 = vld [vmem:[%s701 + $0x18] sm:$0xff]
  %v706 = vld [vmem:[%s701 + $0x20] sm:$0xff]
  %v707 = vld [vmem:[%s701 + $0x28] sm:$0xff]
  %v708 = vld [vmem:[%s701 + $0x30] sm:$0xff]
  %v709 = vld [vmem:[%s701 + $0x38] sm:$0xff]
  %v710 = vld [vmem:[%s701 + $0x40] sm:$0xff]
  %v711 = vld [vmem:[%s701 + $0x48] sm:$0xff]
  %v712 = vld [vmem:[%s701 + $0x50] sm:$0xff]
  %v713 = vld [vmem:[%s701 + $0x58] sm:$0xff]
  %v714 = vld [vmem:[%s701 + $0x60] sm:$0xff]
  %v715 = vld [vmem:[%s701 + $0x68] sm:$0xff]
  %v716 = vld [vmem:[%s701 + $0x70] sm:$0xff]
  %v717 = vld [vmem:[%s701 + $0x78] sm:$0xff]
  %v718 = vld [vmem:[%s701 + $0x80] sm:$0xff]
  %v719 = vld [vmem:[%s701 + $0x88] sm:$0xff]
  %v720 = vld [vmem:[%s701 + $0x90] sm:$0xff]
  %v721 = vld [vmem:[%s701 + $0x98] sm:$0xff]
  %v722 = vld [vmem:[%s701 + $0xa0] sm:$0xff]
  %v723 = vld [vmem:[%s701 + $0xa8] sm:$0xff]
  %v724 = vld [vmem:[%s701 + $0xb0] sm:$0xff]
  %v725 = vld [vmem:[%s701 + $0xb8] sm:$0xff]
  %v726 = vld [vmem:[%s701 + $0xc0] sm:$0xff]
  %v727 = vld [vmem:[%s701 + $0xc8] sm:$0xff]
  %v728 = vld [vmem:[%s701 + $0xd0] sm:$0xff]
  %v729 = vld [vmem:[%s701 + $0xd8] sm:$0xff]
  %v730 = vld [vmem:[%s701 + $0xe0] sm:$0xff]
  %v731 = vld [vmem:[%s701 + $0xe8] sm:$0xff]
  %v732 = vld [vmem:[%s701 + $0xf0] sm:$0xff]
  %v733 = vld [vmem:[%s701 + $0xf8] sm:$0xff]
  %v734 = vld [vmem:[%s701 + $0x100] sm:$0xff]
  %v735 = vld [vmem:[%s701 + $0x108] sm:$0xff]
  %v736 = vld [vmem:[%s701 + $0x110] sm:$0xff]
  %v737 = vld [vmem:[%s701 + $0x118] sm:$0xff]
  %vm744 = vcmask 1046528
  %v745 = vrot.slane %v695, 1
  %v746 = vrot.slane %v698, 1
  %v747 = vsel %vm744, %v745, %v746
  %v748 = vrot.slane %v696, 1
  %v749 = vrot.slane %v699, 1
  %v750 = vsel %vm744, %v748, %v749
  %v751 = vrot.slane %v697, 1
  %v752 = vrot.slane %v700, 1
  %v753 = vsel %vm744, %v751, %v752
  %v792 = vunpack.c.l.b16 %v702
  %v793 = vunpack.c.h.b16 %v702
  %v794 = vunpack.c.l.b16 %v703
  %v795 = vunpack.c.h.b16 %v703
  %v796 = vunpack.c.l.b16 %v704
  %v797 = vunpack.c.h.b16 %v704
  %v798 = vunpack.c.l.b16 %v705
  %v799 = vunpack.c.h.b16 %v705
  %v800 = vunpack.c.l.b16 %v706
  %v801 = vunpack.c.h.b16 %v706
  %v802 = vunpack.c.l.b16 %v707
  %v803 = vunpack.c.h.b16 %v707
  %v804 = vunpack.c.l.b16 %v708
  %v805 = vunpack.c.h.b16 %v708
  %v806 = vunpack.c.l.b16 %v709
  %v807 = vunpack.c.h.b16 %v709
  %v808 = vunpack.c.l.b16 %v710
  %v809 = vunpack.c.h.b16 %v710
  %v810 = vunpack.c.l.b16 %v711
  %v811 = vunpack.c.h.b16 %v711
  %v812 = vunpack.c.l.b16 %v712
  %v813 = vunpack.c.h.b16 %v712
  %v814 = vunpack.c.l.b16 %v713
  %v815 = vunpack.c.h.b16 %v713
  %v816 = vunpack.c.l.b16 %v714
  %v817 = vunpack.c.h.b16 %v714
  %v818 = vunpack.c.l.b16 %v715
  %v819 = vunpack.c.h.b16 %v715
  %v820 = vunpack.c.l.b16 %v716
  %v821 = vunpack.c.h.b16 %v716
  %v822 = vunpack.c.l.b16 %v717
  %v823 = vunpack.c.h.b16 %v717
  %v824 = vunpack.c.l.b16 %v718
  %v825 = vunpack.c.h.b16 %v718
  %v826 = vunpack.c.l.b16 %v719
  %v827 = vunpack.c.h.b16 %v719
  %v828 = vunpack.c.l.b16 %v720
  %v829 = vunpack.c.h.b16 %v720
  %v830 = vunpack.c.l.b16 %v721
  %v831 = vunpack.c.h.b16 %v721
  %v832 = vunpack.c.l.b16 %v722
  %v833 = vunpack.c.h.b16 %v722
  %v834 = vunpack.c.l.b16 %v723
  %v835 = vunpack.c.h.b16 %v723
  %v836 = vunpack.c.l.b16 %v724
  %v837 = vunpack.c.h.b16 %v724
  %v838 = vunpack.c.l.b16 %v725
  %v839 = vunpack.c.h.b16 %v725
  %v840 = vunpack.c.l.b16 %v726
  %v841 = vunpack.c.h.b16 %v726
  %v842 = vunpack.c.l.b16 %v727
  %v843 = vunpack.c.h.b16 %v727
  %v844 = vunpack.c.l.b16 %v728
  %v845 = vunpack.c.h.b16 %v728
  %v846 = vunpack.c.l.b16 %v729
  %v847 = vunpack.c.h.b16 %v729
  %v848 = vunpack.c.l.b16 %v730
  %v849 = vunpack.c.h.b16 %v730
  %v850 = vunpack.c.l.b16 %v731
  %v851 = vunpack.c.h.b16 %v731
  %v852 = vunpack.c.l.b16 %v732
  %v853 = vunpack.c.h.b16 %v732
  %v854 = vunpack.c.l.b16 %v733
  %v855 = vunpack.c.h.b16 %v733
  %v856 = vunpack.c.l.b16 %v734
  %v857 = vunpack.c.h.b16 %v734
  %v858 = vunpack.c.l.b16 %v735
  %v859 = vunpack.c.h.b16 %v735
  %v860 = vunpack.c.l.b16 %v736
  %v861 = vunpack.c.h.b16 %v736
  %v862 = vunpack.c.l.b16 %v737
  %v863 = vunpack.c.h.b16 %v737
  %v864 = vpack.c.b16 %v794, %v792
  %v865 = vpack.c.b16 %v795, %v793
  %v866 = vpack.c.b16 %v798, %v796
  %v867 = vpack.c.b16 %v799, %v797
  %v868 = vpack.c.b16 %v802, %v800
  %v869 = vpack.c.b16 %v803, %v801
  %v870 = vpack.c.b16 %v806, %v804
  %v871 = vpack.c.b16 %v807, %v805
  %v872 = vpack.c.b16 %v810, %v808
  %v873 = vpack.c.b16 %v811, %v809
  %v874 = vpack.c.b16 %v814, %v812
  %v875 = vpack.c.b16 %v815, %v813
  %v876 = vpack.c.b16 %v818, %v816
  %v877 = vpack.c.b16 %v819, %v817
  %v878 = vpack.c.b16 %v822, %v820
  %v879 = vpack.c.b16 %v823, %v821
  %v880 = vpack.c.b16 %v826, %v824
  %v881 = vpack.c.b16 %v827, %v825
  %v882 = vpack.c.b16 %v830, %v828
  %v883 = vpack.c.b16 %v831, %v829
  %v884 = vpack.c.b16 %v834, %v832
  %v885 = vpack.c.b16 %v835, %v833
  %v886 = vpack.c.b16 %v838, %v836
  %v887 = vpack.c.b16 %v839, %v837
  %v888 = vpack.c.b16 %v842, %v840
  %v889 = vpack.c.b16 %v843, %v841
  %v890 = vpack.c.b16 %v846, %v844
  %v891 = vpack.c.b16 %v847, %v845
  %v892 = vpack.c.b16 %v850, %v848
  %v893 = vpack.c.b16 %v851, %v849
  %v894 = vpack.c.b16 %v854, %v852
  %v895 = vpack.c.b16 %v855, %v853
  %v896 = vpack.c.b16 %v858, %v856
  %v897 = vpack.c.b16 %v859, %v857
  %v898 = vpack.c.b16 %v862, %v860
  %v899 = vpack.c.b16 %v863, %v861
  %v937 = vsel %vm334, %v753, 0
  %939 = vmatpush.bf16.msra.mxu0 %v878
  %940 = vmatpush.bf16.msra.mxu0 %v876
  %941 = vmatpush.bf16.msra.mxu0 %v874
  %942 = vmatpush.bf16.msra.mxu0 %v872
  %943 = vmatpush.bf16.msra.mxu0 %v870
  %944 = vmatpush.bf16.msra.mxu0 %v868
  %945 = vmatpush.bf16.msra.mxu0 %v866
  %946 = vmatpush.bf16.msra.mxu0 %v864
  %947 = vmatmul.bf16.gmra.mxu0 %v747
  %v948 = vpop.f32.mrf.mxu0
  %v949 = vadd.f32 0.0, %v948
  %v950 = vpop.f32.mrf.mxu0
  %v951 = vadd.f32 0.0, %v950
  %952 = vdwg.mxu0
  %953 = vmatpush.bf16.msra.mxu0 %v894
  %954 = vmatpush.bf16.msra.mxu0 %v892
  %955 = vmatpush.bf16.msra.mxu0 %v890
  %956 = vmatpush.bf16.msra.mxu0 %v888
  %957 = vmatpush.bf16.msra.mxu0 %v886
  %958 = vmatpush.bf16.msra.mxu0 %v884
  %959 = vmatpush.bf16.msra.mxu0 %v882
  %960 = vmatpush.bf16.msra.mxu0 %v880
  %961 = vmatmul.bf16.gmra.mxu0 %v750
  %v962 = vpop.f32.mrf.mxu0
  %v963 = vadd.f32 %v949, %v962
  %v964 = vpop.f32.mrf.mxu0
  %v965 = vadd.f32 %v951, %v964
  %966 = vdwg.mxu0
  %967 = vmatpush.bf16.msra.mxu0 0
  %968 = vmatpush.bf16.msra.mxu0 0
  %969 = vmatpush.bf16.msra.mxu0 0
  %970 = vmatpush.bf16.msra.mxu0 0
  %971 = vmatpush.bf16.msra.mxu0 0
  %972 = vmatpush.bf16.msra.mxu0 0
  %973 = vmatpush.bf16.msra.mxu0 %v898
  %974 = vmatpush.bf16.msra.mxu0 %v896
  %975 = vmatmul.bf16.gmra.mxu0 %v937
  %v976 = vpop.f32.mrf.mxu0
  %v977 = vadd.f32 %v963, %v976
  %v978 = vpop.f32.mrf.mxu0
  %v979 = vadd.f32 %v965, %v978
  %980 = vdwg.mxu0
  %981 = vmatpush.bf16.msra.mxu0 %v879
  %982 = vmatpush.bf16.msra.mxu0 %v877
  %983 = vmatpush.bf16.msra.mxu0 %v875
  %984 = vmatpush.bf16.msra.mxu0 %v873
  %985 = vmatpush.bf16.msra.mxu0 %v871
  %986 = vmatpush.bf16.msra.mxu0 %v869
  %987 = vmatpush.bf16.msra.mxu0 %v867
  %988 = vmatpush.bf16.msra.mxu0 %v865
  %989 = vmatmul.bf16.gmra.mxu0 %v747
  %v990 = vpop.f32.mrf.mxu0
  %v991 = vadd.f32 0.0, %v990
  %v992 = vpop.f32.mrf.mxu0
  %v993 = vadd.f32 0.0, %v992
  %994 = vdwg.mxu0
  %995 = vmatpush.bf16.msra.mxu0 %v895
  %996 = vmatpush.bf16.msra.mxu0 %v893
  %997 = vmatpush.bf16.msra.mxu0 %v891
  %998 = vmatpush.bf16.msra.mxu0 %v889
  %999 = vmatpush.bf16.msra.mxu0 %v887
  %1000 = vmatpush.bf16.msra.mxu0 %v885
  %1001 = vmatpush.bf16.msra.mxu0 %v883
  %1002 = vmatpush.bf16.msra.mxu0 %v881
  %1003 = vmatmul.bf16.gmra.mxu0 %v750
  %v1004 = vpop.f32.mrf.mxu0
  %v1005 = vadd.f32 %v991, %v1004
  %v1006 = vpop.f32.mrf.mxu0
  %v1007 = vadd.f32 %v993, %v1006
  %1008 = vdwg.mxu0
  %1009 = vmatpush.bf16.msra.mxu0 0
  %1010 = vmatpush.bf16.msra.mxu0 0
  %1011 = vmatpush.bf16.msra.mxu0 0
  %1012 = vmatpush.bf16.msra.mxu0 0
  %1013 = vmatpush.bf16.msra.mxu0 0
  %1014 = vmatpush.bf16.msra.mxu0 0
  %1015 = vmatpush.bf16.msra.mxu0 %v899
  %1016 = vmatpush.bf16.msra.mxu0 %v897
  %1017 = vmatmul.bf16.gmra.mxu0 %v937
  %v1018 = vpop.f32.mrf.mxu0
  %v1019 = vadd.f32 %v1005, %v1018
  %v1020 = vpop.f32.mrf.mxu0
  %v1021 = vadd.f32 %v1007, %v1020
  %1022 = vdwg.mxu0
  %v1023 = vadd.f32 %v643, %v977
  %v1024 = vadd.f32 %v685, %v1019
  %v1025 = vadd.f32 %v645, %v979
  %v1026 = vadd.f32 %v687, %v1021
  %v1027 = vld [vmem:[%s2] sm:$0x3]
  %v1029 = vperm.slane %v1027, 0
  %v1030 = vperm.slane %v1027, 1
  %v1033 = vadd.f32 %v1023, %v1029
  %v1034 = vadd.f32 %v1024, %v1030
  %v1035 = vadd.f32 %v1025, %v1029
  %v1036 = vadd.f32 %v1026, %v1030
  %v1037 = vmax.f32 %v1033, 0.0
  %v1038 = vmax.f32 %v1034, 0.0
  %v1039 = vmax.f32 %v1035, 0.0
  %v1040 = vmax.f32 %v1036, 0.0
  %1041 = vst [vmem:[#allocation2] sm:$0xff] %v1037
  %1042 = vst [vmem:[#allocation2 + $0x8] sm:$0xff] %v1038
  %1043 = vst [vmem:[#allocation2 + $0x10] sm:$0xff] %v1039
  %1044 = vst [vmem:[#allocation2 + $0x18] sm:$0xff] %v1040
  %v1045 = vadd.f32 %v1037, %v1039
  %v1046 = vrot.slane %v1045, 4
  %v1047 = vadd.f32 %v1045, %v1046
  %v1048 = vrot.slane %v1047, 2
  %v1049 = vadd.f32 %v1047, %v1048
  %v1050 = vrot.slane %v1049, 1
  %v1051 = vadd.f32 %v1049, %v1050
  %v1052 = vadd.f32 %v1038, %v1040
  %v1053 = vrot.slane %v1052, 4
  %v1054 = vadd.f32 %v1052, %v1053
  %v1055 = vrot.slane %v1054, 2
  %v1056 = vadd.f32 %v1054, %v1055
  %v1057 = vrot.slane %v1056, 1
  %v1058 = vadd.f32 %v1056, %v1057
  %v1059 = vadd.f32 %v1051, 0.0
  %v1060 = vadd.f32 %v1058, 0.0
  %v1061 = vmul.f32 %v1037, %v1037
  %v1062 = vmul.f32 %v1038, %v1038
  %v1063 = vmul.f32 %v1039, %v1039
  %v1064 = vmul.f32 %v1040, %v1040
  %v1065 = vadd.f32 %v1061, %v1063
  %v1066 = vrot.slane %v1065, 4
  %v1067 = vadd.f32 %v1065, %v1066
  %v1068 = vrot.slane %v1067, 2
  %v1069 = vadd.f32 %v1067, %v1068
  %v1070 = vrot.slane %v1069, 1
  %v1071 = vadd.f32 %v1069, %v1070
  %v1072 = vadd.f32 %v1062, %v1064
  %v1073 = vrot.slane %v1072, 4
  %v1074 = vadd.f32 %v1072, %v1073
  %v1075 = vrot.slane %v1074, 2
  %v1076 = vadd.f32 %v1074, %v1075
  %v1077 = vrot.slane %v1076, 1
  %v1078 = vadd.f32 %v1076, %v1077
  %v1079 = vadd.f32 %v1071, 0.0
  %v1080 = vadd.f32 %v1078, 0.0
  %s1081 = scalar_lea.vmem %s0, 72
  %v1082 = vld [vmem:[%s1081] sm:$0xff]
  %v1083 = vld [vmem:[%s1081 + $0x8] sm:$0xff]
  %v1084 = vld [vmem:[%s1081 + $0x10] sm:$0xff]
  %v1085 = vld [vmem:[%s1081 + $0x18] sm:$0xff]
  %v1086 = vld [vmem:[%s1081 + $0x20] sm:$0xff]
  %v1087 = vld [vmem:[%s1081 + $0x28] sm:$0xff]
  %v1088 = vpack.c.bf16 %v1085, %v1082
  %v1089 = vpack.c.bf16 %v1086, %v1083
  %v1090 = vpack.c.bf16 %v1087, %v1084
  %v1091 = vld [vmem:[%s1] sm:$0xff]
  %v1092 = vld [vmem:[%s1 + $0x8] sm:$0xff]
  %v1093 = vld [vmem:[%s1 + $0x10] sm:$0xff]
  %v1094 = vld [vmem:[%s1 + $0x18] sm:$0xff]
  %v1095 = vld [vmem:[%s1 + $0x20] sm:$0xff]
  %v1096 = vld [vmem:[%s1 + $0x28] sm:$0xff]
  %v1097 = vld [vmem:[%s1 + $0x30] sm:$0xff]
  %v1098 = vld [vmem:[%s1 + $0x38] sm:$0xff]
  %v1099 = vld [vmem:[%s1 + $0x40] sm:$0xff]
  %v1100 = vld [vmem:[%s1 + $0x48] sm:$0xff]
  %v1101 = vld [vmem:[%s1 + $0x50] sm:$0xff]
  %v1102 = vld [vmem:[%s1 + $0x58] sm:$0xff]
  %v1103 = vld [vmem:[%s1 + $0x60] sm:$0xff]
  %v1104 = vld [vmem:[%s1 + $0x68] sm:$0xff]
  %v1105 = vld [vmem:[%s1 + $0x70] sm:$0xff]
  %v1106 = vld [vmem:[%s1 + $0x78] sm:$0xff]
  %v1107 = vld [vmem:[%s1 + $0x80] sm:$0xff]
  %v1108 = vld [vmem:[%s1 + $0x88] sm:$0xff]
  %v1109 = vld [vmem:[%s1 + $0x90] sm:$0xff]
  %v1110 = vld [vmem:[%s1 + $0x98] sm:$0xff]
  %v1111 = vld [vmem:[%s1 + $0xa0] sm:$0xff]
  %v1112 = vld [vmem:[%s1 + $0xa8] sm:$0xff]
  %v1113 = vld [vmem:[%s1 + $0xb0] sm:$0xff]
  %v1114 = vld [vmem:[%s1 + $0xb8] sm:$0xff]
  %v1115 = vld [vmem:[%s1 + $0xc0] sm:$0xff]
  %v1116 = vld [vmem:[%s1 + $0xc8] sm:$0xff]
  %v1117 = vld [vmem:[%s1 + $0xd0] sm:$0xff]
  %v1118 = vld [vmem:[%s1 + $0xd8] sm:$0xff]
  %v1119 = vld [vmem:[%s1 + $0xe0] sm:$0xff]
  %v1120 = vld [vmem:[%s1 + $0xe8] sm:$0xff]
  %v1121 = vld [vmem:[%s1 + $0xf0] sm:$0xff]
  %v1122 = vld [vmem:[%s1 + $0xf8] sm:$0xff]
  %v1123 = vld [vmem:[%s1 + $0x100] sm:$0xff]
  %v1124 = vld [vmem:[%s1 + $0x108] sm:$0xff]
  %v1125 = vld [vmem:[%s1 + $0x110] sm:$0xff]
  %v1126 = vld [vmem:[%s1 + $0x118] sm:$0xff]
  %v1127 = vld [vmem:[%s1081] sm:$0xfe]
  %v1128 = vld [vmem:[%s1081 + $0x8] sm:$0xfe]
  %v1129 = vld [vmem:[%s1081 + $0x10] sm:$0xfe]
  %v1130 = vld [vmem:[%s1081 + $0x30] sm:$0x1]
  %v1131 = vld [vmem:[%s1081 + $0x38] sm:$0x1]
  %v1132 = vld [vmem:[%s1081 + $0x40] sm:$0x1]
  %v1133 = vpack.c.bf16 %v1085, %v1127
  %v1134 = vpack.c.bf16 %v1086, %v1128
  %v1135 = vpack.c.bf16 %v1087, %v1129
  %v1136 = vpack.c.bf16 %v1130, %v1130
  %v1137 = vpack.c.bf16 %v1131, %v1131
  %v1138 = vpack.c.bf16 %v1132, %v1132
  %v1139 = vld [vmem:[%s78] sm:$0xff]
  %v1140 = vld [vmem:[%s78 + $0x8] sm:$0xff]
  %v1141 = vld [vmem:[%s78 + $0x10] sm:$0xff]
  %v1142 = vld [vmem:[%s78 + $0x18] sm:$0xff]
  %v1143 = vld [vmem:[%s78 + $0x20] sm:$0xff]
  %v1144 = vld [vmem:[%s78 + $0x28] sm:$0xff]
  %v1145 = vld [vmem:[%s78 + $0x30] sm:$0xff]
  %v1146 = vld [vmem:[%s78 + $0x38] sm:$0xff]
  %v1147 = vld [vmem:[%s78 + $0x40] sm:$0xff]
  %v1148 = vld [vmem:[%s78 + $0x48] sm:$0xff]
  %v1149 = vld [vmem:[%s78 + $0x50] sm:$0xff]
  %v1150 = vld [vmem:[%s78 + $0x58] sm:$0xff]
  %v1151 = vld [vmem:[%s78 + $0x60] sm:$0xff]
  %v1152 = vld [vmem:[%s78 + $0x68] sm:$0xff]
  %v1153 = vld [vmem:[%s78 + $0x70] sm:$0xff]
  %v1154 = vld [vmem:[%s78 + $0x78] sm:$0xff]
  %v1155 = vld [vmem:[%s78 + $0x80] sm:$0xff]
  %v1156 = vld [vmem:[%s78 + $0x88] sm:$0xff]
  %v1157 = vld [vmem:[%s78 + $0x90] sm:$0xff]
  %v1158 = vld [vmem:[%s78 + $0x98] sm:$0xff]
  %v1159 = vld [vmem:[%s78 + $0xa0] sm:$0xff]
  %v1160 = vld [vmem:[%s78 + $0xa8] sm:$0xff]
  %v1161 = vld [vmem:[%s78 + $0xb0] sm:$0xff]
  %v1162 = vld [vmem:[%s78 + $0xb8] sm:$0xff]
  %v1163 = vld [vmem:[%s78 + $0xc0] sm:$0xff]
  %v1164 = vld [vmem:[%s78 + $0xc8] sm:$0xff]
  %v1165 = vld [vmem:[%s78 + $0xd0] sm:$0xff]
  %v1166 = vld [vmem:[%s78 + $0xd8] sm:$0xff]
  %v1167 = vld [vmem:[%s78 + $0xe0] sm:$0xff]
  %v1168 = vld [vmem:[%s78 + $0xe8] sm:$0xff]
  %v1169 = vld [vmem:[%s78 + $0xf0] sm:$0xff]
  %v1170 = vld [vmem:[%s78 + $0xf8] sm:$0xff]
  %v1171 = vld [vmem:[%s78 + $0x100] sm:$0xff]
  %v1172 = vld [vmem:[%s78 + $0x108] sm:$0xff]
  %v1173 = vld [vmem:[%s78 + $0x110] sm:$0xff]
  %v1174 = vld [vmem:[%s78 + $0x118] sm:$0xff]
  %v1176 = vshrl.u32 %v1133, 16
  %v1178 = vshll.u32 %v1133, 16
  %v1180 = vrot.slane %v1178, 1
  %v1181 = vor.u32 %v1176, %v1180
  %v1183 = vshll.u32 %v1136, 16
  %v1185 = vrot.slane %v1183, 1
  %v1186 = vsel %vm115, %v1181, %v1185
  %v1188 = vshrl.u32 %v1134, 16
  %v1190 = vshll.u32 %v1134, 16
  %v1192 = vrot.slane %v1190, 1
  %v1193 = vor.u32 %v1188, %v1192
  %v1195 = vshll.u32 %v1137, 16
  %v1197 = vrot.slane %v1195, 1
  %v1198 = vsel %vm115, %v1193, %v1197
  %v1200 = vshrl.u32 %v1135, 16
  %v1202 = vshll.u32 %v1135, 16
  %v1204 = vrot.slane %v1202, 1
  %v1205 = vor.u32 %v1200, %v1204
  %v1207 = vshll.u32 %v1138, 16
  %v1209 = vrot.slane %v1207, 1
  %v1210 = vsel %vm115, %v1205, %v1209
  %v1249 = vunpack.c.l.b16 %v1139
  %v1250 = vunpack.c.h.b16 %v1139
  %v1251 = vunpack.c.l.b16 %v1140
  %v1252 = vunpack.c.h.b16 %v1140
  %v1253 = vunpack.c.l.b16 %v1141
  %v1254 = vunpack.c.h.b16 %v1141
  %v1255 = vunpack.c.l.b16 %v1142
  %v1256 = vunpack.c.h.b16 %v1142
  %v1257 = vunpack.c.l.b16 %v1143
  %v1258 = vunpack.c.h.b16 %v1143
  %v1259 = vunpack.c.l.b16 %v1144
  %v1260 = vunpack.c.h.b16 %v1144
  %v1261 = vunpack.c.l.b16 %v1145
  %v1262 = vunpack.c.h.b16 %v1145
  %v1263 = vunpack.c.l.b16 %v1146
  %v1264 = vunpack.c.h.b16 %v1146
  %v1265 = vunpack.c.l.b16 %v1147
  %v1266 = vunpack.c.h.b16 %v1147
  %v1267 = vunpack.c.l.b16 %v1148
  %v1268 = vunpack.c.h.b16 %v1148
  %v1269 = vunpack.c.l.b16 %v1149
  %v1270 = vunpack.c.h.b16 %v1149
  %v1271 = vunpack.c.l.b16 %v1150
  %v1272 = vunpack.c.h.b16 %v1150
  %v1273 = vunpack.c.l.b16 %v1151
  %v1274 = vunpack.c.h.b16 %v1151
  %v1275 = vunpack.c.l.b16 %v1152
  %v1276 = vunpack.c.h.b16 %v1152
  %v1277 = vunpack.c.l.b16 %v1153
  %v1278 = vunpack.c.h.b16 %v1153
  %v1279 = vunpack.c.l.b16 %v1154
  %v1280 = vunpack.c.h.b16 %v1154
  %v1281 = vunpack.c.l.b16 %v1155
  %v1282 = vunpack.c.h.b16 %v1155
  %v1283 = vunpack.c.l.b16 %v1156
  %v1284 = vunpack.c.h.b16 %v1156
  %v1285 = vunpack.c.l.b16 %v1157
  %v1286 = vunpack.c.h.b16 %v1157
  %v1287 = vunpack.c.l.b16 %v1158
  %v1288 = vunpack.c.h.b16 %v1158
  %v1289 = vunpack.c.l.b16 %v1159
  %v1290 = vunpack.c.h.b16 %v1159
  %v1291 = vunpack.c.l.b16 %v1160
  %v1292 = vunpack.c.h.b16 %v1160
  %v1293 = vunpack.c.l.b16 %v1161
  %v1294 = vunpack.c.h.b16 %v1161
  %v1295 = vunpack.c.l.b16 %v1162
  %v1296 = vunpack.c.h.b16 %v1162
  %v1297 = vunpack.c.l.b16 %v1163
  %v1298 = vunpack.c.h.b16 %v1163
  %v1299 = vunpack.c.l.b16 %v1164
  %v1300 = vunpack.c.h.b16 %v1164
  %v1301 = vunpack.c.l.b16 %v1165
  %v1302 = vunpack.c.h.b16 %v1165
  %v1303 = vunpack.c.l.b16 %v1166
  %v1304 = vunpack.c.h.b16 %v1166
  %v1305 = vunpack.c.l.b16 %v1167
  %v1306 = vunpack.c.h.b16 %v1167
  %v1307 = vunpack.c.l.b16 %v1168
  %v1308 = vunpack.c.h.b16 %v1168
  %v1309 = vunpack.c.l.b16 %v1169
  %v1310 = vunpack.c.h.b16 %v1169
  %v1311 = vunpack.c.l.b16 %v1170
  %v1312 = vunpack.c.h.b16 %v1170
  %v1313 = vunpack.c.l.b16 %v1171
  %v1314 = vunpack.c.h.b16 %v1171
  %v1315 = vunpack.c.l.b16 %v1172
  %v1316 = vunpack.c.h.b16 %v1172
  %v1317 = vunpack.c.l.b16 %v1173
  %v1318 = vunpack.c.h.b16 %v1173
  %v1319 = vunpack.c.l.b16 %v1174
  %v1320 = vunpack.c.h.b16 %v1174
  %v1321 = vpack.c.b16 %v1251, %v1249
  %v1322 = vpack.c.b16 %v1252, %v1250
  %v1323 = vpack.c.b16 %v1255, %v1253
  %v1324 = vpack.c.b16 %v1256, %v1254
  %v1325 = vpack.c.b16 %v1259, %v1257
  %v1326 = vpack.c.b16 %v1260, %v1258
  %v1327 = vpack.c.b16 %v1263, %v1261
  %v1328 = vpack.c.b16 %v1264, %v1262
  %v1329 = vpack.c.b16 %v1267, %v1265
  %v1330 = vpack.c.b16 %v1268, %v1266
  %v1331 = vpack.c.b16 %v1271, %v1269
  %v1332 = vpack.c.b16 %v1272, %v1270
  %v1333 = vpack.c.b16 %v1275, %v1273
  %v1334 = vpack.c.b16 %v1276, %v1274
  %v1335 = vpack.c.b16 %v1279, %v1277
  %v1336 = vpack.c.b16 %v1280, %v1278
  %v1337 = vpack.c.b16 %v1283, %v1281
  %v1338 = vpack.c.b16 %v1284, %v1282
  %v1339 = vpack.c.b16 %v1287, %v1285
  %v1340 = vpack.c.b16 %v1288, %v1286
  %v1341 = vpack.c.b16 %v1291, %v1289
  %v1342 = vpack.c.b16 %v1292, %v1290
  %v1343 = vpack.c.b16 %v1295, %v1293
  %v1344 = vpack.c.b16 %v1296, %v1294
  %v1345 = vpack.c.b16 %v1299, %v1297
  %v1346 = vpack.c.b16 %v1300, %v1298
  %v1347 = vpack.c.b16 %v1303, %v1301
  %v1348 = vpack.c.b16 %v1304, %v1302
  %v1349 = vpack.c.b16 %v1307, %v1305
  %v1350 = vpack.c.b16 %v1308, %v1306
  %v1351 = vpack.c.b16 %v1311, %v1309
  %v1352 = vpack.c.b16 %v1312, %v1310
  %v1353 = vpack.c.b16 %v1315, %v1313
  %v1354 = vpack.c.b16 %v1316, %v1314
  %v1355 = vpack.c.b16 %v1319, %v1317
  %v1356 = vpack.c.b16 %v1320, %v1318
  %v1394 = vsel %vm334, %v1210, 0
  %1396 = vmatpush.bf16.msra.mxu0 %v1335
  %1397 = vmatpush.bf16.msra.mxu0 %v1333
  %1398 = vmatpush.bf16.msra.mxu0 %v1331
  %1399 = vmatpush.bf16.msra.mxu0 %v1329
  %1400 = vmatpush.bf16.msra.mxu0 %v1327
  %1401 = vmatpush.bf16.msra.mxu0 %v1325
  %1402 = vmatpush.bf16.msra.mxu0 %v1323
  %1403 = vmatpush.bf16.msra.mxu0 %v1321
  %1404 = vmatmul.bf16.gmra.mxu0 %v1186
  %v1405 = vpop.f32.mrf.mxu0
  %v1406 = vadd.f32 0.0, %v1405
  %v1407 = vpop.f32.mrf.mxu0
  %v1408 = vadd.f32 0.0, %v1407
  %1409 = vdwg.mxu0
  %1410 = vmatpush.bf16.msra.mxu0 %v1351
  %1411 = vmatpush.bf16.msra.mxu0 %v1349
  %1412 = vmatpush.bf16.msra.mxu0 %v1347
  %1413 = vmatpush.bf16.msra.mxu0 %v1345
  %1414 = vmatpush.bf16.msra.mxu0 %v1343
  %1415 = vmatpush.bf16.msra.mxu0 %v1341
  %1416 = vmatpush.bf16.msra.mxu0 %v1339
  %1417 = vmatpush.bf16.msra.mxu0 %v1337
  %1418 = vmatmul.bf16.gmra.mxu0 %v1198
  %v1419 = vpop.f32.mrf.mxu0
  %v1420 = vadd.f32 %v1406, %v1419
  %v1421 = vpop.f32.mrf.mxu0
  %v1422 = vadd.f32 %v1408, %v1421
  %1423 = vdwg.mxu0
  %1424 = vmatpush.bf16.msra.mxu0 0
  %1425 = vmatpush.bf16.msra.mxu0 0
  %1426 = vmatpush.bf16.msra.mxu0 0
  %1427 = vmatpush.bf16.msra.mxu0 0
  %1428 = vmatpush.bf16.msra.mxu0 0
  %1429 = vmatpush.bf16.msra.mxu0 0
  %1430 = vmatpush.bf16.msra.mxu0 %v1355
  %1431 = vmatpush.bf16.msra.mxu0 %v1353
  %1432 = vmatmul.bf16.gmra.mxu0 %v1394
  %v1433 = vpop.f32.mrf.mxu0
  %v1434 = vadd.f32 %v1420, %v1433
  %v1435 = vpop.f32.mrf.mxu0
  %v1436 = vadd.f32 %v1422, %v1435
  %1437 = vdwg.mxu0
  %1438 = vmatpush.bf16.msra.mxu0 %v1336
  %1439 = vmatpush.bf16.msra.mxu0 %v1334
  %1440 = vmatpush.bf16.msra.mxu0 %v1332
  %1441 = vmatpush.bf16.msra.mxu0 %v1330
  %1442 = vmatpush.bf16.msra.mxu0 %v1328
  %1443 = vmatpush.bf16.msra.mxu0 %v1326
  %1444 = vmatpush.bf16.msra.mxu0 %v1324
  %1445 = vmatpush.bf16.msra.mxu0 %v1322
  %1446 = vmatmul.bf16.gmra.mxu0 %v1186
  %v1447 = vpop.f32.mrf.mxu0
  %v1448 = vadd.f32 0.0, %v1447
  %v1449 = vpop.f32.mrf.mxu0
  %v1450 = vadd.f32 0.0, %v1449
  %1451 = vdwg.mxu0
  %1452 = vmatpush.bf16.msra.mxu0 %v1352
  %1453 = vmatpush.bf16.msra.mxu0 %v1350
  %1454 = vmatpush.bf16.msra.mxu0 %v1348
  %1455 = vmatpush.bf16.msra.mxu0 %v1346
  %1456 = vmatpush.bf16.msra.mxu0 %v1344
  %1457 = vmatpush.bf16.msra.mxu0 %v1342
  %1458 = vmatpush.bf16.msra.mxu0 %v1340
  %1459 = vmatpush.bf16.msra.mxu0 %v1338
  %1460 = vmatmul.bf16.gmra.mxu0 %v1198
  %v1461 = vpop.f32.mrf.mxu0
  %v1462 = vadd.f32 %v1448, %v1461
  %v1463 = vpop.f32.mrf.mxu0
  %v1464 = vadd.f32 %v1450, %v1463
  %1465 = vdwg.mxu0
  %1466 = vmatpush.bf16.msra.mxu0 0
  %1467 = vmatpush.bf16.msra.mxu0 0
  %1468 = vmatpush.bf16.msra.mxu0 0
  %1469 = vmatpush.bf16.msra.mxu0 0
  %1470 = vmatpush.bf16.msra.mxu0 0
  %1471 = vmatpush.bf16.msra.mxu0 0
  %1472 = vmatpush.bf16.msra.mxu0 %v1356
  %1473 = vmatpush.bf16.msra.mxu0 %v1354
  %1474 = vmatmul.bf16.gmra.mxu0 %v1394
  %v1475 = vpop.f32.mrf.mxu0
  %v1476 = vadd.f32 %v1462, %v1475
  %v1477 = vpop.f32.mrf.mxu0
  %v1478 = vadd.f32 %v1464, %v1477
  %1479 = vdwg.mxu0
  %v1516 = vunpack.c.l.b16 %v1091
  %v1517 = vunpack.c.h.b16 %v1091
  %v1518 = vunpack.c.l.b16 %v1092
  %v1519 = vunpack.c.h.b16 %v1092
  %v1520 = vunpack.c.l.b16 %v1093
  %v1521 = vunpack.c.h.b16 %v1093
  %v1522 = vunpack.c.l.b16 %v1094
  %v1523 = vunpack.c.h.b16 %v1094
  %v1524 = vunpack.c.l.b16 %v1095
  %v1525 = vunpack.c.h.b16 %v1095
  %v1526 = vunpack.c.l.b16 %v1096
  %v1527 = vunpack.c.h.b16 %v1096
  %v1528 = vunpack.c.l.b16 %v1097
  %v1529 = vunpack.c.h.b16 %v1097
  %v1530 = vunpack.c.l.b16 %v1098
  %v1531 = vunpack.c.h.b16 %v1098
  %v1532 = vunpack.c.l.b16 %v1099
  %v1533 = vunpack.c.h.b16 %v1099
  %v1534 = vunpack.c.l.b16 %v1100
  %v1535 = vunpack.c.h.b16 %v1100
  %v1536 = vunpack.c.l.b16 %v1101
  %v1537 = vunpack.c.h.b16 %v1101
  %v1538 = vunpack.c.l.b16 %v1102
  %v1539 = vunpack.c.h.b16 %v1102
  %v1540 = vunpack.c.l.b16 %v1103
  %v1541 = vunpack.c.h.b16 %v1103
  %v1542 = vunpack.c.l.b16 %v1104
  %v1543 = vunpack.c.h.b16 %v1104
  %v1544 = vunpack.c.l.b16 %v1105
  %v1545 = vunpack.c.h.b16 %v1105
  %v1546 = vunpack.c.l.b16 %v1106
  %v1547 = vunpack.c.h.b16 %v1106
  %v1548 = vunpack.c.l.b16 %v1107
  %v1549 = vunpack.c.h.b16 %v1107
  %v1550 = vunpack.c.l.b16 %v1108
  %v1551 = vunpack.c.h.b16 %v1108
  %v1552 = vunpack.c.l.b16 %v1109
  %v1553 = vunpack.c.h.b16 %v1109
  %v1554 = vunpack.c.l.b16 %v1110
  %v1555 = vunpack.c.h.b16 %v1110
  %v1556 = vunpack.c.l.b16 %v1111
  %v1557 = vunpack.c.h.b16 %v1111
  %v1558 = vunpack.c.l.b16 %v1112
  %v1559 = vunpack.c.h.b16 %v1112
  %v1560 = vunpack.c.l.b16 %v1113
  %v1561 = vunpack.c.h.b16 %v1113
  %v1562 = vunpack.c.l.b16 %v1114
  %v1563 = vunpack.c.h.b16 %v1114
  %v1564 = vunpack.c.l.b16 %v1115
  %v1565 = vunpack.c.h.b16 %v1115
  %v1566 = vunpack.c.l.b16 %v1116
  %v1567 = vunpack.c.h.b16 %v1116
  %v1568 = vunpack.c.l.b16 %v1117
  %v1569 = vunpack.c.h.b16 %v1117
  %v1570 = vunpack.c.l.b16 %v1118
  %v1571 = vunpack.c.h.b16 %v1118
  %v1572 = vunpack.c.l.b16 %v1119
  %v1573 = vunpack.c.h.b16 %v1119
  %v1574 = vunpack.c.l.b16 %v1120
  %v1575 = vunpack.c.h.b16 %v1120
  %v1576 = vunpack.c.l.b16 %v1121
  %v1577 = vunpack.c.h.b16 %v1121
  %v1578 = vunpack.c.l.b16 %v1122
  %v1579 = vunpack.c.h.b16 %v1122
  %v1580 = vunpack.c.l.b16 %v1123
  %v1581 = vunpack.c.h.b16 %v1123
  %v1582 = vunpack.c.l.b16 %v1124
  %v1583 = vunpack.c.h.b16 %v1124
  %v1584 = vunpack.c.l.b16 %v1125
  %v1585 = vunpack.c.h.b16 %v1125
  %v1586 = vunpack.c.l.b16 %v1126
  %v1587 = vunpack.c.h.b16 %v1126
  %v1588 = vpack.c.b16 %v1518, %v1516
  %v1589 = vpack.c.b16 %v1519, %v1517
  %v1590 = vpack.c.b16 %v1522, %v1520
  %v1591 = vpack.c.b16 %v1523, %v1521
  %v1592 = vpack.c.b16 %v1526, %v1524
  %v1593 = vpack.c.b16 %v1527, %v1525
  %v1594 = vpack.c.b16 %v1530, %v1528
  %v1595 = vpack.c.b16 %v1531, %v1529
  %v1596 = vpack.c.b16 %v1534, %v1532
  %v1597 = vpack.c.b16 %v1535, %v1533
  %v1598 = vpack.c.b16 %v1538, %v1536
  %v1599 = vpack.c.b16 %v1539, %v1537
  %v1600 = vpack.c.b16 %v1542, %v1540
  %v1601 = vpack.c.b16 %v1543, %v1541
  %v1602 = vpack.c.b16 %v1546, %v1544
  %v1603 = vpack.c.b16 %v1547, %v1545
  %v1604 = vpack.c.b16 %v1550, %v1548
  %v1605 = vpack.c.b16 %v1551, %v1549
  %v1606 = vpack.c.b16 %v1554, %v1552
  %v1607 = vpack.c.b16 %v1555, %v1553
  %v1608 = vpack.c.b16 %v1558, %v1556
  %v1609 = vpack.c.b16 %v1559, %v1557
  %v1610 = vpack.c.b16 %v1562, %v1560
  %v1611 = vpack.c.b16 %v1563, %v1561
  %v1612 = vpack.c.b16 %v1566, %v1564
  %v1613 = vpack.c.b16 %v1567, %v1565
  %v1614 = vpack.c.b16 %v1570, %v1568
  %v1615 = vpack.c.b16 %v1571, %v1569
  %v1616 = vpack.c.b16 %v1574, %v1572
  %v1617 = vpack.c.b16 %v1575, %v1573
  %v1618 = vpack.c.b16 %v1578, %v1576
  %v1619 = vpack.c.b16 %v1579, %v1577
  %v1620 = vpack.c.b16 %v1582, %v1580
  %v1621 = vpack.c.b16 %v1583, %v1581
  %v1622 = vpack.c.b16 %v1586, %v1584
  %v1623 = vpack.c.b16 %v1587, %v1585
  %v1661 = vsel %vm334, %v1090, 0
  %1663 = vmatpush.bf16.msra.mxu0 %v1602
  %1664 = vmatpush.bf16.msra.mxu0 %v1600
  %1665 = vmatpush.bf16.msra.mxu0 %v1598
  %1666 = vmatpush.bf16.msra.mxu0 %v1596
  %1667 = vmatpush.bf16.msra.mxu0 %v1594
  %1668 = vmatpush.bf16.msra.mxu0 %v1592
  %1669 = vmatpush.bf16.msra.mxu0 %v1590
  %1670 = vmatpush.bf16.msra.mxu0 %v1588
  %1671 = vmatmul.bf16.gmra.mxu0 %v1088
  %v1672 = vpop.f32.mrf.mxu0
  %v1673 = vadd.f32 %v1434, %v1672
  %v1674 = vpop.f32.mrf.mxu0
  %v1675 = vadd.f32 %v1436, %v1674
  %1676 = vdwg.mxu0
  %1677 = vmatpush.bf16.msra.mxu0 %v1618
  %1678 = vmatpush.bf16.msra.mxu0 %v1616
  %1679 = vmatpush.bf16.msra.mxu0 %v1614
  %1680 = vmatpush.bf16.msra.mxu0 %v1612
  %1681 = vmatpush.bf16.msra.mxu0 %v1610
  %1682 = vmatpush.bf16.msra.mxu0 %v1608
  %1683 = vmatpush.bf16.msra.mxu0 %v1606
  %1684 = vmatpush.bf16.msra.mxu0 %v1604
  %1685 = vmatmul.bf16.gmra.mxu0 %v1089
  %v1686 = vpop.f32.mrf.mxu0
  %v1687 = vadd.f32 %v1673, %v1686
  %v1688 = vpop.f32.mrf.mxu0
  %v1689 = vadd.f32 %v1675, %v1688
  %1690 = vdwg.mxu0
  %1691 = vmatpush.bf16.msra.mxu0 0
  %1692 = vmatpush.bf16.msra.mxu0 0
  %1693 = vmatpush.bf16.msra.mxu0 0
  %1694 = vmatpush.bf16.msra.mxu0 0
  %1695 = vmatpush.bf16.msra.mxu0 0
  %1696 = vmatpush.bf16.msra.mxu0 0
  %1697 = vmatpush.bf16.msra.mxu0 %v1622
  %1698 = vmatpush.bf16.msra.mxu0 %v1620
  %1699 = vmatmul.bf16.gmra.mxu0 %v1661
  %v1700 = vpop.f32.mrf.mxu0
  %v1701 = vadd.f32 %v1687, %v1700
  %v1702 = vpop.f32.mrf.mxu0
  %v1703 = vadd.f32 %v1689, %v1702
  %1704 = vdwg.mxu0
  %1705 = vmatpush.bf16.msra.mxu0 %v1603
  %1706 = vmatpush.bf16.msra.mxu0 %v1601
  %1707 = vmatpush.bf16.msra.mxu0 %v1599
  %1708 = vmatpush.bf16.msra.mxu0 %v1597
  %1709 = vmatpush.bf16.msra.mxu0 %v1595
  %1710 = vmatpush.bf16.msra.mxu0 %v1593
  %1711 = vmatpush.bf16.msra.mxu0 %v1591
  %1712 = vmatpush.bf16.msra.mxu0 %v1589
  %1713 = vmatmul.bf16.gmra.mxu0 %v1088
  %v1714 = vpop.f32.mrf.mxu0
  %v1715 = vadd.f32 %v1476, %v1714
  %v1716 = vpop.f32.mrf.mxu0
  %v1717 = vadd.f32 %v1478, %v1716
  %1718 = vdwg.mxu0
  %1719 = vmatpush.bf16.msra.mxu0 %v1619
  %1720 = vmatpush.bf16.msra.mxu0 %v1617
  %1721 = vmatpush.bf16.msra.mxu0 %v1615
  %1722 = vmatpush.bf16.msra.mxu0 %v1613
  %1723 = vmatpush.bf16.msra.mxu0 %v1611
  %1724 = vmatpush.bf16.msra.mxu0 %v1609
  %1725 = vmatpush.bf16.msra.mxu0 %v1607
  %1726 = vmatpush.bf16.msra.mxu0 %v1605
  %1727 = vmatmul.bf16.gmra.mxu0 %v1089
  %v1728 = vpop.f32.mrf.mxu0
  %v1729 = vadd.f32 %v1715, %v1728
  %v1730 = vpop.f32.mrf.mxu0
  %v1731 = vadd.f32 %v1717, %v1730
  %1732 = vdwg.mxu0
  %1733 = vmatpush.bf16.msra.mxu0 0
  %1734 = vmatpush.bf16.msra.mxu0 0
  %1735 = vmatpush.bf16.msra.mxu0 0
  %1736 = vmatpush.bf16.msra.mxu0 0
  %1737 = vmatpush.bf16.msra.mxu0 0
  %1738 = vmatpush.bf16.msra.mxu0 0
  %1739 = vmatpush.bf16.msra.mxu0 %v1623
  %1740 = vmatpush.bf16.msra.mxu0 %v1621
  %1741 = vmatmul.bf16.gmra.mxu0 %v1661
  %v1742 = vpop.f32.mrf.mxu0
  %v1743 = vadd.f32 %v1729, %v1742
  %v1744 = vpop.f32.mrf.mxu0
  %v1745 = vadd.f32 %v1731, %v1744
  %1746 = vdwg.mxu0
  %v1747 = vld [vmem:[%s1081] sm:$0xfc]
  %v1748 = vld [vmem:[%s1081 + $0x8] sm:$0xfc]
  %v1749 = vld [vmem:[%s1081 + $0x10] sm:$0xfc]
  %v1750 = vld [vmem:[%s1081 + $0x30] sm:$0x3]
  %v1751 = vld [vmem:[%s1081 + $0x38] sm:$0x3]
  %v1752 = vld [vmem:[%s1081 + $0x40] sm:$0x3]
  %v1753 = vpack.c.bf16 %v1085, %v1747
  %v1754 = vpack.c.bf16 %v1086, %v1748
  %v1755 = vpack.c.bf16 %v1087, %v1749
  %v1756 = vpack.c.bf16 %v1750, %v1750
  %v1757 = vpack.c.bf16 %v1751, %v1751
  %v1758 = vpack.c.bf16 %v1752, %v1752
  %v1759 = vld [vmem:[%s701] sm:$0xff]
  %v1760 = vld [vmem:[%s701 + $0x8] sm:$0xff]
  %v1761 = vld [vmem:[%s701 + $0x10] sm:$0xff]
  %v1762 = vld [vmem:[%s701 + $0x18] sm:$0xff]
  %v1763 = vld [vmem:[%s701 + $0x20] sm:$0xff]
  %v1764 = vld [vmem:[%s701 + $0x28] sm:$0xff]
  %v1765 = vld [vmem:[%s701 + $0x30] sm:$0xff]
  %v1766 = vld [vmem:[%s701 + $0x38] sm:$0xff]
  %v1767 = vld [vmem:[%s701 + $0x40] sm:$0xff]
  %v1768 = vld [vmem:[%s701 + $0x48] sm:$0xff]
  %v1769 = vld [vmem:[%s701 + $0x50] sm:$0xff]
  %v1770 = vld [vmem:[%s701 + $0x58] sm:$0xff]
  %v1771 = vld [vmem:[%s701 + $0x60] sm:$0xff]
  %v1772 = vld [vmem:[%s701 + $0x68] sm:$0xff]
  %v1773 = vld [vmem:[%s701 + $0x70] sm:$0xff]
  %v1774 = vld [vmem:[%s701 + $0x78] sm:$0xff]
  %v1775 = vld [vmem:[%s701 + $0x80] sm:$0xff]
  %v1776 = vld [vmem:[%s701 + $0x88] sm:$0xff]
  %v1777 = vld [vmem:[%s701 + $0x90] sm:$0xff]
  %v1778 = vld [vmem:[%s701 + $0x98] sm:$0xff]
  %v1779 = vld [vmem:[%s701 + $0xa0] sm:$0xff]
  %v1780 = vld [vmem:[%s701 + $0xa8] sm:$0xff]
  %v1781 = vld [vmem:[%s701 + $0xb0] sm:$0xff]
  %v1782 = vld [vmem:[%s701 + $0xb8] sm:$0xff]
  %v1783 = vld [vmem:[%s701 + $0xc0] sm:$0xff]
  %v1784 = vld [vmem:[%s701 + $0xc8] sm:$0xff]
  %v1785 = vld [vmem:[%s701 + $0xd0] sm:$0xff]
  %v1786 = vld [vmem:[%s701 + $0xd8] sm:$0xff]
  %v1787 = vld [vmem:[%s701 + $0xe0] sm:$0xff]
  %v1788 = vld [vmem:[%s701 + $0xe8] sm:$0xff]
  %v1789 = vld [vmem:[%s701 + $0xf0] sm:$0xff]
  %v1790 = vld [vmem:[%s701 + $0xf8] sm:$0xff]
  %v1791 = vld [vmem:[%s701 + $0x100] sm:$0xff]
  %v1792 = vld [vmem:[%s701 + $0x108] sm:$0xff]
  %v1793 = vld [vmem:[%s701 + $0x110] sm:$0xff]
  %v1794 = vld [vmem:[%s701 + $0x118] sm:$0xff]
  %v1801 = vrot.slane %v1753, 1
  %v1802 = vrot.slane %v1756, 1
  %v1803 = vsel %vm744, %v1801, %v1802
  %v1804 = vrot.slane %v1754, 1
  %v1805 = vrot.slane %v1757, 1
  %v1806 = vsel %vm744, %v1804, %v1805
  %v1807 = vrot.slane %v1755, 1
  %v1808 = vrot.slane %v1758, 1
  %v1809 = vsel %vm744, %v1807, %v1808
  %v1848 = vunpack.c.l.b16 %v1759
  %v1849 = vunpack.c.h.b16 %v1759
  %v1850 = vunpack.c.l.b16 %v1760
  %v1851 = vunpack.c.h.b16 %v1760
  %v1852 = vunpack.c.l.b16 %v1761
  %v1853 = vunpack.c.h.b16 %v1761
  %v1854 = vunpack.c.l.b16 %v1762
  %v1855 = vunpack.c.h.b16 %v1762
  %v1856 = vunpack.c.l.b16 %v1763
  %v1857 = vunpack.c.h.b16 %v1763
  %v1858 = vunpack.c.l.b16 %v1764
  %v1859 = vunpack.c.h.b16 %v1764
  %v1860 = vunpack.c.l.b16 %v1765
  %v1861 = vunpack.c.h.b16 %v1765
  %v1862 = vunpack.c.l.b16 %v1766
  %v1863 = vunpack.c.h.b16 %v1766
  %v1864 = vunpack.c.l.b16 %v1767
  %v1865 = vunpack.c.h.b16 %v1767
  %v1866 = vunpack.c.l.b16 %v1768
  %v1867 = vunpack.c.h.b16 %v1768
  %v1868 = vunpack.c.l.b16 %v1769
  %v1869 = vunpack.c.h.b16 %v1769
  %v1870 = vunpack.c.l.b16 %v1770
  %v1871 = vunpack.c.h.b16 %v1770
  %v1872 = vunpack.c.l.b16 %v1771
  %v1873 = vunpack.c.h.b16 %v1771
  %v1874 = vunpack.c.l.b16 %v1772
  %v1875 = vunpack.c.h.b16 %v1772
  %v1876 = vunpack.c.l.b16 %v1773
  %v1877 = vunpack.c.h.b16 %v1773
  %v1878 = vunpack.c.l.b16 %v1774
  %v1879 = vunpack.c.h.b16 %v1774
  %v1880 = vunpack.c.l.b16 %v1775
  %v1881 = vunpack.c.h.b16 %v1775
  %v1882 = vunpack.c.l.b16 %v1776
  %v1883 = vunpack.c.h.b16 %v1776
  %v1884 = vunpack.c.l.b16 %v1777
  %v1885 = vunpack.c.h.b16 %v1777
  %v1886 = vunpack.c.l.b16 %v1778
  %v1887 = vunpack.c.h.b16 %v1778
  %v1888 = vunpack.c.l.b16 %v1779
  %v1889 = vunpack.c.h.b16 %v1779
  %v1890 = vunpack.c.l.b16 %v1780
  %v1891 = vunpack.c.h.b16 %v1780
  %v1892 = vunpack.c.l.b16 %v1781
  %v1893 = vunpack.c.h.b16 %v1781
  %v1894 = vunpack.c.l.b16 %v1782
  %v1895 = vunpack.c.h.b16 %v1782
  %v1896 = vunpack.c.l.b16 %v1783
  %v1897 = vunpack.c.h.b16 %v1783
  %v1898 = vunpack.c.l.b16 %v1784
  %v1899 = vunpack.c.h.b16 %v1784
  %v1900 = vunpack.c.l.b16 %v1785
  %v1901 = vunpack.c.h.b16 %v1785
  %v1902 = vunpack.c.l.b16 %v1786
  %v1903 = vunpack.c.h.b16 %v1786
  %v1904 = vunpack.c.l.b16 %v1787
  %v1905 = vunpack.c.h.b16 %v1787
  %v1906 = vunpack.c.l.b16 %v1788
  %v1907 = vunpack.c.h.b16 %v1788
  %v1908 = vunpack.c.l.b16 %v1789
  %v1909 = vunpack.c.h.b16 %v1789
  %v1910 = vunpack.c.l.b16 %v1790
  %v1911 = vunpack.c.h.b16 %v1790
  %v1912 = vunpack.c.l.b16 %v1791
  %v1913 = vunpack.c.h.b16 %v1791
  %v1914 = vunpack.c.l.b16 %v1792
  %v1915 = vunpack.c.h.b16 %v1792
  %v1916 = vunpack.c.l.b16 %v1793
  %v1917 = vunpack.c.h.b16 %v1793
  %v1918 = vunpack.c.l.b16 %v1794
  %v1919 = vunpack.c.h.b16 %v1794
  %v1920 = vpack.c.b16 %v1850, %v1848
  %v1921 = vpack.c.b16 %v1851, %v1849
  %v1922 = vpack.c.b16 %v1854, %v1852
  %v1923 = vpack.c.b16 %v1855, %v1853
  %v1924 = vpack.c.b16 %v1858, %v1856
  %v1925 = vpack.c.b16 %v1859, %v1857
  %v1926 = vpack.c.b16 %v1862, %v1860
  %v1927 = vpack.c.b16 %v1863, %v1861
  %v1928 = vpack.c.b16 %v1866, %v1864
  %v1929 = vpack.c.b16 %v1867, %v1865
  %v1930 = vpack.c.b16 %v1870, %v1868
  %v1931 = vpack.c.b16 %v1871, %v1869
  %v1932 = vpack.c.b16 %v1874, %v1872
  %v1933 = vpack.c.b16 %v1875, %v1873
  %v1934 = vpack.c.b16 %v1878, %v1876
  %v1935 = vpack.c.b16 %v1879, %v1877
  %v1936 = vpack.c.b16 %v1882, %v1880
  %v1937 = vpack.c.b16 %v1883, %v1881
  %v1938 = vpack.c.b16 %v1886, %v1884
  %v1939 = vpack.c.b16 %v1887, %v1885
  %v1940 = vpack.c.b16 %v1890, %v1888
  %v1941 = vpack.c.b16 %v1891, %v1889
  %v1942 = vpack.c.b16 %v1894, %v1892
  %v1943 = vpack.c.b16 %v1895, %v1893
  %v1944 = vpack.c.b16 %v1898, %v1896
  %v1945 = vpack.c.b16 %v1899, %v1897
  %v1946 = vpack.c.b16 %v1902, %v1900
  %v1947 = vpack.c.b16 %v1903, %v1901
  %v1948 = vpack.c.b16 %v1906, %v1904
  %v1949 = vpack.c.b16 %v1907, %v1905
  %v1950 = vpack.c.b16 %v1910, %v1908
  %v1951 = vpack.c.b16 %v1911, %v1909
  %v1952 = vpack.c.b16 %v1914, %v1912
  %v1953 = vpack.c.b16 %v1915, %v1913
  %v1954 = vpack.c.b16 %v1918, %v1916
  %v1955 = vpack.c.b16 %v1919, %v1917
  %v1993 = vsel %vm334, %v1809, 0
  %1995 = vmatpush.bf16.msra.mxu0 %v1934
  %1996 = vmatpush.bf16.msra.mxu0 %v1932
  %1997 = vmatpush.bf16.msra.mxu0 %v1930
  %1998 = vmatpush.bf16.msra.mxu0 %v1928
  %1999 = vmatpush.bf16.msra.mxu0 %v1926
  %2000 = vmatpush.bf16.msra.mxu0 %v1924
  %2001 = vmatpush.bf16.msra.mxu0 %v1922
  %2002 = vmatpush.bf16.msra.mxu0 %v1920
  %2003 = vmatmul.bf16.gmra.mxu0 %v1803
  %v2004 = vpop.f32.mrf.mxu0
  %v2005 = vadd.f32 0.0, %v2004
  %v2006 = vpop.f32.mrf.mxu0
  %v2007 = vadd.f32 0.0, %v2006
  %2008 = vdwg.mxu0
  %2009 = vmatpush.bf16.msra.mxu0 %v1950
  %2010 = vmatpush.bf16.msra.mxu0 %v1948
  %2011 = vmatpush.bf16.msra.mxu0 %v1946
  %2012 = vmatpush.bf16.msra.mxu0 %v1944
  %2013 = vmatpush.bf16.msra.mxu0 %v1942
  %2014 = vmatpush.bf16.msra.mxu0 %v1940
  %2015 = vmatpush.bf16.msra.mxu0 %v1938
  %2016 = vmatpush.bf16.msra.mxu0 %v1936
  %2017 = vmatmul.bf16.gmra.mxu0 %v1806
  %v2018 = vpop.f32.mrf.mxu0
  %v2019 = vadd.f32 %v2005, %v2018
  %v2020 = vpop.f32.mrf.mxu0
  %v2021 = vadd.f32 %v2007, %v2020
  %2022 = vdwg.mxu0
  %2023 = vmatpush.bf16.msra.mxu0 0
  %2024 = vmatpush.bf16.msra.mxu0 0
  %2025 = vmatpush.bf16.msra.mxu0 0
  %2026 = vmatpush.bf16.msra.mxu0 0
  %2027 = vmatpush.bf16.msra.mxu0 0
  %2028 = vmatpush.bf16.msra.mxu0 0
  %2029 = vmatpush.bf16.msra.mxu0 %v1954
  %2030 = vmatpush.bf16.msra.mxu0 %v1952
  %2031 = vmatmul.bf16.gmra.mxu0 %v1993
  %v2032 = vpop.f32.mrf.mxu0
  %v2033 = vadd.f32 %v2019, %v2032
  %v2034 = vpop.f32.mrf.mxu0
  %v2035 = vadd.f32 %v2021, %v2034
  %2036 = vdwg.mxu0
  %2037 = vmatpush.bf16.msra.mxu0 %v1935
  %2038 = vmatpush.bf16.msra.mxu0 %v1933
  %2039 = vmatpush.bf16.msra.mxu0 %v1931
  %2040 = vmatpush.bf16.msra.mxu0 %v1929
  %2041 = vmatpush.bf16.msra.mxu0 %v1927
  %2042 = vmatpush.bf16.msra.mxu0 %v1925
  %2043 = vmatpush.bf16.msra.mxu0 %v1923
  %2044 = vmatpush.bf16.msra.mxu0 %v1921
  %2045 = vmatmul.bf16.gmra.mxu0 %v1803
  %v2046 = vpop.f32.mrf.mxu0
  %v2047 = vadd.f32 0.0, %v2046
  %v2048 = vpop.f32.mrf.mxu0
  %v2049 = vadd.f32 0.0, %v2048
  %2050 = vdwg.mxu0
  %2051 = vmatpush.bf16.msra.mxu0 %v1951
  %2052 = vmatpush.bf16.msra.mxu0 %v1949
  %2053 = vmatpush.bf16.msra.mxu0 %v1947
  %2054 = vmatpush.bf16.msra.mxu0 %v1945
  %2055 = vmatpush.bf16.msra.mxu0 %v1943
  %2056 = vmatpush.bf16.msra.mxu0 %v1941
  %2057 = vmatpush.bf16.msra.mxu0 %v1939
  %2058 = vmatpush.bf16.msra.mxu0 %v1937
  %2059 = vmatmul.bf16.gmra.mxu0 %v1806
  %v2060 = vpop.f32.mrf.mxu0
  %v2061 = vadd.f32 %v2047, %v2060
  %v2062 = vpop.f32.mrf.mxu0
  %v2063 = vadd.f32 %v2049, %v2062
  %2064 = vdwg.mxu0
  %2065 = vmatpush.bf16.msra.mxu0 0
  %2066 = vmatpush.bf16.msra.mxu0 0
  %2067 = vmatpush.bf16.msra.mxu0 0
  %2068 = vmatpush.bf16.msra.mxu0 0
  %2069 = vmatpush.bf16.msra.mxu0 0
  %2070 = vmatpush.bf16.msra.mxu0 0
  %2071 = vmatpush.bf16.msra.mxu0 %v1955
  %2072 = vmatpush.bf16.msra.mxu0 %v1953
  %2073 = vmatmul.bf16.gmra.mxu0 %v1993
  %v2074 = vpop.f32.mrf.mxu0
  %v2075 = vadd.f32 %v2061, %v2074
  %v2076 = vpop.f32.mrf.mxu0
  %v2077 = vadd.f32 %v2063, %v2076
  %2078 = vdwg.mxu0
  %v2079 = vadd.f32 %v1701, %v2033
  %v2080 = vadd.f32 %v1743, %v2075
  %v2081 = vadd.f32 %v1703, %v2035
  %v2082 = vadd.f32 %v1745, %v2077
  %v2083 = vld [vmem:[%s2] sm:$0x3]
  %v2085 = vperm.slane %v2083, 0
  %v2086 = vperm.slane %v2083, 1
  %v2089 = vadd.f32 %v2079, %v2085
  %v2090 = vadd.f32 %v2080, %v2086
  %v2091 = vadd.f32 %v2081, %v2085
  %v2092 = vadd.f32 %v2082, %v2086
  %v2093 = vmax.f32 %v2089, 0.0
  %v2094 = vmax.f32 %v2090, 0.0
  %v2095 = vmax.f32 %v2091, 0.0
  %v2096 = vmax.f32 %v2092, 0.0
  %s2097 = scalar_lea.vmem [#allocation2], 32
  %2098 = vst [vmem:[%s2097] sm:$0xff] %v2093
  %2099 = vst [vmem:[%s2097 + $0x8] sm:$0xff] %v2094
  %2100 = vst [vmem:[%s2097 + $0x10] sm:$0xff] %v2095
  %2101 = vst [vmem:[%s2097 + $0x18] sm:$0xff] %v2096
  %v2102 = vadd.f32 %v2093, %v2095
  %v2103 = vrot.slane %v2102, 4
  %v2104 = vadd.f32 %v2102, %v2103
  %v2105 = vrot.slane %v2104, 2
  %v2106 = vadd.f32 %v2104, %v2105
  %v2107 = vrot.slane %v2106, 1
  %v2108 = vadd.f32 %v2106, %v2107
  %v2109 = vadd.f32 %v2094, %v2096
  %v2110 = vrot.slane %v2109, 4
  %v2111 = vadd.f32 %v2109, %v2110
  %v2112 = vrot.slane %v2111, 2
  %v2113 = vadd.f32 %v2111, %v2112
  %v2114 = vrot.slane %v2113, 1
  %v2115 = vadd.f32 %v2113, %v2114
  %v2116 = vadd.f32 %v1059, %v2108
  %v2117 = vadd.f32 %v1060, %v2115
  %v2118 = vmul.f32 %v2093, %v2093
  %v2119 = vmul.f32 %v2094, %v2094
  %v2120 = vmul.f32 %v2095, %v2095
  %v2121 = vmul.f32 %v2096, %v2096
  %v2122 = vadd.f32 %v2118, %v2120
  %v2123 = vrot.slane %v2122, 4
  %v2124 = vadd.f32 %v2122, %v2123
  %v2125 = vrot.slane %v2124, 2
  %v2126 = vadd.f32 %v2124, %v2125
  %v2127 = vrot.slane %v2126, 1
  %v2128 = vadd.f32 %v2126, %v2127
  %v2129 = vadd.f32 %v2119, %v2121
  %v2130 = vrot.slane %v2129, 4
  %v2131 = vadd.f32 %v2129, %v2130
  %v2132 = vrot.slane %v2131, 2
  %v2133 = vadd.f32 %v2131, %v2132
  %v2134 = vrot.slane %v2133, 1
  %v2135 = vadd.f32 %v2133, %v2134
  %v2136 = vadd.f32 %v1079, %v2128
  %v2137 = vadd.f32 %v1080, %v2135
  %v2138 = vadd.f32 %v2116, 0.0
  %v2139 = vadd.f32 %v2136, 0.0
  %2141 = vrot.lane.b32.xlu0 %v2116, 112
  %v2142 = vpop.permute.xlu0 %2141
  %v2144 = vadd.f32 %v2138, %v2142
  %2146 = vrot.lane.b32.xlu0 %v2136, 112
  %v2147 = vpop.permute.xlu0 %2146
  %v2149 = vadd.f32 %v2139, %v2147
  %2150 = vrot.lane.b32.xlu0 %v2116, 96
  %v2151 = vpop.permute.xlu0 %2150
  %v2153 = vadd.f32 %v2144, %v2151
  %2154 = vrot.lane.b32.xlu0 %v2136, 96
  %v2155 = vpop.permute.xlu0 %2154
  %v2157 = vadd.f32 %v2149, %v2155
  %2158 = vrot.lane.b32.xlu0 %v2116, 80
  %v2159 = vpop.permute.xlu0 %2158
  %v2161 = vadd.f32 %v2153, %v2159
  %2162 = vrot.lane.b32.xlu0 %v2136, 80
  %v2163 = vpop.permute.xlu0 %2162
  %v2165 = vadd.f32 %v2157, %v2163
  %2166 = vrot.lane.b32.xlu0 %v2116, 64
  %v2167 = vpop.permute.xlu0 %2166
  %v2169 = vadd.f32 %v2161, %v2167
  %2170 = vrot.lane.b32.xlu0 %v2136, 64
  %v2171 = vpop.permute.xlu0 %2170
  %v2173 = vadd.f32 %v2165, %v2171
  %2174 = vrot.lane.b32.xlu0 %v2116, 48
  %v2175 = vpop.permute.xlu0 %2174
  %v2177 = vadd.f32 %v2169, %v2175
  %2178 = vrot.lane.b32.xlu0 %v2136, 48
  %v2179 = vpop.permute.xlu0 %2178
  %v2181 = vadd.f32 %v2173, %v2179
  %2182 = vrot.lane.b32.xlu0 %v2116, 32
  %v2183 = vpop.permute.xlu0 %2182
  %v2185 = vadd.f32 %v2177, %v2183
  %2186 = vrot.lane.b32.xlu0 %v2136, 32
  %v2187 = vpop.permute.xlu0 %2186
  %v2189 = vadd.f32 %v2181, %v2187
  %2190 = vrot.lane.b32.xlu0 %v2116, 16
  %v2191 = vpop.permute.xlu0 %2190
  %v2193 = vadd.f32 %v2185, %v2191
  %2194 = vrot.lane.b32.xlu0 %v2136, 16
  %v2195 = vpop.permute.xlu0 %2194
  %v2197 = vadd.f32 %v2189, %v2195
  %v2198 = vadd.f32 %v2193, %v2117
  %v2199 = vadd.f32 %v2197, %v2137
  %2201 = vrot.lane.b32.xlu0 %v2117, 112
  %v2202 = vpop.permute.xlu0 %2201
  %v2204 = vadd.f32 %v2198, %v2202
  %2206 = vrot.lane.b32.xlu0 %v2137, 112
  %v2207 = vpop.permute.xlu0 %2206
  %v2209 = vadd.f32 %v2199, %v2207
  %2210 = vrot.lane.b32.xlu0 %v2117, 96
  %v2211 = vpop.permute.xlu0 %2210
  %v2213 = vadd.f32 %v2204, %v2211
  %2214 = vrot.lane.b32.xlu0 %v2137, 96
  %v2215 = vpop.permute.xlu0 %2214
  %v2217 = vadd.f32 %v2209, %v2215
  %2218 = vrot.lane.b32.xlu0 %v2117, 80
  %v2219 = vpop.permute.xlu0 %2218
  %v2221 = vadd.f32 %v2213, %v2219
  %2222 = vrot.lane.b32.xlu0 %v2137, 80
  %v2223 = vpop.permute.xlu0 %2222
  %v2225 = vadd.f32 %v2217, %v2223
  %2226 = vrot.lane.b32.xlu0 %v2117, 64
  %v2227 = vpop.permute.xlu0 %2226
  %v2229 = vadd.f32 %v2221, %v2227
  %2230 = vrot.lane.b32.xlu0 %v2137, 64
  %v2231 = vpop.permute.xlu0 %2230
  %v2233 = vadd.f32 %v2225, %v2231
  %2234 = vrot.lane.b32.xlu0 %v2117, 48
  %v2235 = vpop.permute.xlu0 %2234
  %v2237 = vadd.f32 %v2229, %v2235
  %2238 = vrot.lane.b32.xlu0 %v2137, 48
  %v2239 = vpop.permute.xlu0 %2238
  %v2241 = vadd.f32 %v2233, %v2239
  %2242 = vrot.lane.b32.xlu0 %v2117, 32
  %v2243 = vpop.permute.xlu0 %2242
  %v2245 = vadd.f32 %v2237, %v2243
  %2246 = vrot.lane.b32.xlu0 %v2137, 32
  %v2247 = vpop.permute.xlu0 %2246
  %v2249 = vadd.f32 %v2241, %v2247
  %2250 = vrot.lane.b32.xlu0 %v2117, 16
  %v2251 = vpop.permute.xlu0 %2250
  %v2253 = vadd.f32 %v2245, %v2251
  %2254 = vrot.lane.b32.xlu0 %v2137, 16
  %v2255 = vpop.permute.xlu0 %2254
  %v2257 = vadd.f32 %v2249, %v2255
  %v2258 = vmul.f32 %v2253, 0.001953125
  %v2259 = vmul.f32 %v2257, 0.001953125
  %v2260 = vmul.f32 %v2258, %v2258
  %v2261 = vsub.f32 %v2259, %v2260
  %v2262 = vadd.f32 %v2261, 1e-05
  %v2263 = vrsqrt.pop %v2262
  %v2264 = vmul.f32 %v2263, %v2262
  %v2265 = vmul.f32 %v2264, %v2263
  %v2266 = vmul.f32 0.5, %v2265
  %v2267 = vsub.f32 1.5, %v2266
  %v2268 = vmul.f32 %v2263, %v2267
  %vm2269 = vweird.f32 %v2262
  %vm2270 = vweird.f32 %v2263
  %vm2271 = vmor %vm2269, %vm2270
  %v2272 = vsel %vm2271, %v2263, %v2268
  %2274 = vrot.lane.b32.xlu0 %v2258, 16
  %v2275 = vpop.permute.xlu0 %2274
  %2277 = vrot.lane.b32.xlu0 %v2258, 32
  %v2278 = vpop.permute.xlu0 %2277
  %2280 = vrot.lane.b32.xlu0 %v2258, 48
  %v2281 = vpop.permute.xlu0 %2280
  %2283 = vrot.lane.b32.xlu0 %v2258, 64
  %v2284 = vpop.permute.xlu0 %2283
  %2286 = vrot.lane.b32.xlu0 %v2258, 80
  %v2287 = vpop.permute.xlu0 %2286
  %2289 = vrot.lane.b32.xlu0 %v2258, 96
  %v2290 = vpop.permute.xlu0 %2289
  %2292 = vrot.lane.b32.xlu0 %v2258, 112
  %v2293 = vpop.permute.xlu0 %2292
  %vm2295 = vcmask 130048
  %v2296 = vsel %vm2295, %v2258, %v2275
  %v2297 = vsel %vm334, %v2296, %v2278
  %vm2298 = vcmask 392192
  %v2299 = vsel %vm2298, %v2297, %v2281
  %vm2300 = vcmask 523264
  %v2301 = vsel %vm2300, %v2299, %v2284
  %vm2302 = vcmask 654336
  %v2303 = vsel %vm2302, %v2301, %v2287
  %vm2304 = vcmask 785408
  %v2305 = vsel %vm2304, %v2303, %v2290
  %vm2306 = vcmask 916480
  %v2307 = vsel %vm2306, %v2305, %v2293
  %2309 = vrot.lane.b32.xlu0 %v2272, 16
  %v2310 = vpop.permute.xlu0 %2309
  %2312 = vrot.lane.b32.xlu0 %v2272, 32
  %v2313 = vpop.permute.xlu0 %2312
  %2315 = vrot.lane.b32.xlu0 %v2272, 48
  %v2316 = vpop.permute.xlu0 %2315
  %2318 = vrot.lane.b32.xlu0 %v2272, 64
  %v2319 = vpop.permute.xlu0 %2318
  %2321 = vrot.lane.b32.xlu0 %v2272, 80
  %v2322 = vpop.permute.xlu0 %2321
  %2324 = vrot.lane.b32.xlu0 %v2272, 96
  %v2325 = vpop.permute.xlu0 %2324
  %2327 = vrot.lane.b32.xlu0 %v2272, 112
  %v2328 = vpop.permute.xlu0 %2327
  %v2330 = vsel %vm2295, %v2272, %v2310
  %v2331 = vsel %vm334, %v2330, %v2313
  %v2332 = vsel %vm2298, %v2331, %v2316
  %v2333 = vsel %vm2300, %v2332, %v2319
  %v2334 = vsel %vm2302, %v2333, %v2322
  %v2335 = vsel %vm2304, %v2334, %v2325
  %v2336 = vsel %vm2306, %v2335, %v2328
  %v2337 = vld [vmem:[%s3] sm:$0x3]
  %v2339 = vrot.slane %v2336, 7
  %vm2340 = vcmask 1040384
  %v2341 = vsel %vm2340, %v2336, %v2339
  %v2343 = vmul.f32 %v2337, %v2341
  %v2344 = vld [vmem:[%s4] sm:$0x3]
  %v2346 = vperm.slane %v2343, 0
  %v2347 = vperm.slane %v2343, 1
  %v2350 = vmul.f32 %v2307, %v2346
  %v2351 = vmul.f32 %v2307, %v2347
  %v2354 = vrot.slane %v2351, 7
  %v2355 = vsel %vm2340, %v2350, %v2354
  %v2357 = vsub.f32 %v2344, %v2355
  %v2358 = vld [vmem:[#allocation2] sm:$0xff]
  %v2359 = vld [vmem:[#allocation2 + $0x8] sm:$0xff]
  %v2360 = vld [vmem:[#allocation2 + $0x10] sm:$0xff]
  %v2361 = vld [vmem:[#allocation2 + $0x18] sm:$0xff]
  %v2362 = vmul.f32 %v2358, %v2346
  %v2363 = vmul.f32 %v2359, %v2347
  %v2364 = vmul.f32 %v2360, %v2346
  %v2365 = vmul.f32 %v2361, %v2347
  %v2367 = vperm.slane %v2357, 0
  %v2368 = vperm.slane %v2357, 1
  %v2371 = vadd.f32 %v2362, %v2367
  %v2372 = vadd.f32 %v2363, %v2368
  %v2373 = vadd.f32 %v2364, %v2367
  %v2374 = vadd.f32 %v2365, %v2368
  %2375 = vst [vmem:[%s5] sm:$0xff] %v2371
  %2376 = vst [vmem:[%s5 + $0x8] sm:$0xff] %v2372
  %2377 = vst [vmem:[%s5 + $0x10] sm:$0xff] %v2373
  %2378 = vst [vmem:[%s5 + $0x18] sm:$0xff] %v2374
  %v2379 = vld [vmem:[%s2097] sm:$0xff]
  %v2380 = vld [vmem:[%s2097 + $0x8] sm:$0xff]
  %v2381 = vld [vmem:[%s2097 + $0x10] sm:$0xff]
  %v2382 = vld [vmem:[%s2097 + $0x18] sm:$0xff]
  %v2383 = vmul.f32 %v2379, %v2346
  %v2384 = vmul.f32 %v2380, %v2347
  %v2385 = vmul.f32 %v2381, %v2346
  %v2386 = vmul.f32 %v2382, %v2347
  %v2387 = vadd.f32 %v2383, %v2367
  %v2388 = vadd.f32 %v2384, %v2368
  %v2389 = vadd.f32 %v2385, %v2367
  %v2390 = vadd.f32 %v2386, %v2368
  %s2391 = scalar_lea.vmem %s5, 32
  %2392 = vst [vmem:[%s2391] sm:$0xff] %v2387
  %2393 = vst [vmem:[%s2391 + $0x8] sm:$0xff] %v2388
  %2394 = vst [vmem:[%s2391 + $0x10] sm:$0xff] %v2389
  %2395 = vst [vmem:[%s2391 + $0x18] sm:$0xff] %v2390
  // Predicated region
  $region22: #{conv_bridge_forward.1} parent=0 // pred_check
    _
  $region23: #{conv_bridge_forward.1} parent=0 // pred_check_branch
    %2397 = sbr.rel (0) target = $region25
  $region24: #{conv_bridge_forward.1} parent=0 // pred_region
    _
  $region25: #{conv_bridge_forward.1} parent=0 // pred_fallthru
    _
  // Predicated region
  $region26: #{conv_bridge_forward.1} parent=0 // pred_check
    _
  $region27: #{conv_bridge_forward.1} parent=0 // pred_check_branch
    %2399 = sbr.rel (0) target = $region29
  $region28: #{conv_bridge_forward.1} parent=0 // pred_region
    _
  $region29: #{conv_bridge_forward.1} parent=0 // pred_fallthru
    _

</llo_original>
